<compile_context>
chip_gen: v7x
topology: tpu7x:2x2x1
jax: 0.10.0
libtpu: 0.0.40
codegen_flags: <defaults>
</compile_context>

<pallas_src>
import functools

import jax
import jax.numpy as jnp
from jax.experimental import pallas as pl
from jax.experimental.pallas import tpu as pltpu


def _adaattn_flash_kernel(q_ref, k_ref, v_ref, cx_ref, out_ref,
                          m_sc, acc_m, acc_v, *, ns_real, mask_ns, exp_dtype):
    """One (batch, Nc-tile, Ns-tile) step of AdaAttN attention.

    q_ref  : (1, Ckp, tq)   content queries, channel-major (Ck padded to 128)
    k_ref  : (1, tk,  Ckp)  style keys, token-major
    v_ref  : (1, Cp,  tk)   style values, channel-major (C padded to 8)
    cx_ref : (1, C,   tq)   content features to be re-normalized (f32)
    out_ref: (1, C,   tq)
    scratch: m_sc (1, tq) f32 running max
             acc_m (Cp, tq) f32 running mean numerator
             acc_v (Cp+8, tq) f32 running [E[v^2] numerator ; softmax denom]
    """
    j = pl.program_id(2)

    @pl.when(j == 0)
    def _():
        m_sc[...] = jnp.full_like(m_sc, -jnp.inf)
        acc_m[...] = jnp.zeros_like(acc_m)
        acc_v[...] = jnp.zeros_like(acc_v)

    q = q_ref[0]          # (Ckp, tq)
    k = k_ref[0]          # (tk, Ckp)
    v = v_ref[0]          # (Cp, tk)
    tk = k.shape[0]

    # logits[m, n] = K_m . Q_n  -> (tk, tq); contract (last, first): plain MXU matmul.
    s = jax.lax.dot_general(k, q, (((1,), (0,)), ((), ())),
                            preferred_element_type=jnp.float32)

    if mask_ns:
        # Padded style tokens (index >= ns_real) are excluded from the softmax.
        row = jax.lax.broadcasted_iota(jnp.int32, (tk, 1), 0)
        s = jnp.where(j * tk + row < ns_real, s, -jnp.inf)

    # Online softmax over the style (sublane) axis; stats are (1, tq) rows, f32.
    m_prev = m_sc[...]
    m_new = jnp.maximum(m_prev, jnp.max(s, axis=0, keepdims=True))
    alpha = jnp.exp(m_prev - m_new)                                   # (1, tq) f32
    # exp directly in bf16 on v6e/v7x (values in [0,1] after max-subtraction).
    p = jnp.exp((s - m_new).astype(exp_dtype))                        # (tk, tq)
    p_mm = p.astype(v.dtype)

    # Fused moment matmuls; the denominator rides on the same MXU pass as an
    # extra 8-row block of ones (replicated column sums; row Cp used later).
    ones = jnp.ones((8, tk), v.dtype)
    v2o = jnp.concatenate([v * v, ones], axis=0)                      # (Cp+8, tk)
    pv = jax.lax.dot_general(v, p_mm, (((1,), (0,)), ((), ())),
                             preferred_element_type=jnp.float32)      # (Cp, tq)
    pv2 = jax.lax.dot_general(v2o, p_mm, (((1,), (0,)), ((), ())),
                              preferred_element_type=jnp.float32)     # (Cp+8, tq)
    acc_m[...] = alpha * acc_m[...] + pv
    acc_v[...] = alpha * acc_v[...] + pv2
    m_sc[...] = m_new

    @pl.when(j == pl.num_programs(2) - 1)
    def _():
        C = cx_ref.shape[1]
        Cp = v_ref.shape[1]
        # Exact reciprocal: once per output tile, off the hot path.
        inv_l = pl.reciprocal(acc_v[Cp:Cp + 1, :], approx=False)      # (1, tq)
        mean = acc_m[:C, :] * inv_l                                   # (C, tq)
        ex2 = acc_v[:C, :] * inv_l                                    # (C, tq)
        std = jnp.sqrt(jnp.maximum(ex2 - mean * mean, 0.0))
        out_ref[0] = (std * cx_ref[0] + mean).astype(out_ref.dtype)


def _round_up(n, m):
    return ((n + m - 1) // m) * m


def _tpu_config():
    """Per-generation (tq_cap, tk_cap, vmem_limit_bytes, n_tensorcores, bf16_exp_ok)."""
    try:
        kind = jax.devices()[0].device_kind.lower()
    except Exception:
        kind = ""
    if "v7" in kind or "7x" in kind:
        # 64 MiB VMEM per TC, 2 TCs per chip; keep AI high (tq) and leave headroom.
        return 512, 1024, 48 * 1024 * 1024, 2, True
    if "v6" in kind:
        return 512, 1024, 100 * 1024 * 1024, 1, True
    if "v5" in kind:
        # MXU-bound at tq=512; larger tk halves acc-rescale passes. No bf16 EUP.
        return 512, 2048, 96 * 1024 * 1024, 1, False
    return 512, 1024, 64 * 1024 * 1024, 1, True


def _choose_tile(n, cap):
    """Largest multiple-of-128 divisor of n (n itself a multiple of 128) <= cap."""
    if n <= cap:
        return n
    t = (min(cap, n) // 128) * 128
    while t >= 128:
        if n % t == 0:
            return t
        t -= 128
    return 128


def adaattn_forward(c_x, s_x, c_1x, s_1x, params, *,
                    compute_dtype=jnp.bfloat16, tq=None, tk=None):
    """AdaAttN forward. All tensors are NCHW float32.

    c_x  : (B, C,  Hc, Wc)   content features (value dims)
    s_x  : (B, C,  Hs, Ws)   style features   (value dims)
    c_1x : (B, Ck, Hc, Wc)   content key features
    s_1x : (B, Ck, Hs, Ws)   style key features
    """
    wf, bf, wg, bg, wh, bh = (params[k] for k in ("wf", "bf", "wg", "bg", "wh", "bh"))

    B, C, Hc, Wc = c_x.shape
    _, Ck, _, _ = c_1x.shape
    _, _, Hs, Ws = s_1x.shape
    Nc = Hc * Wc
    Ns = Hs * Ws

    # NCHW -> channel-major flattened spatial (no transposes needed).
    c1x_f = c_1x.reshape(B, Ck, Nc)
    s1x_f = s_1x.reshape(B, Ck, Ns)
    sx_f = s_x.reshape(B, C, Ns)
    cx_cm = c_x.reshape(B, C, Nc)

    # Hoisted 1x1-conv projections as plain XLA batched matmuls, biases folded in.
    q = jnp.einsum("oc,bcn->bon", wf, c1x_f) + bf[None, :, None]   # (B, Ck, Nc) channel-major
    k = jnp.einsum("oc,bcn->bno", wg, s1x_f) + bg[None, None, :]   # (B, Ns, Ck) token-major
    v = jnp.einsum("oc,bcn->bon", wh, sx_f) + bh[None, :, None]    # (B, C,  Ns) channel-major

    # Padding: Ck -> multiple of 128 (lane-dense K tiles; zero contraction pad
    # is exact), C -> multiple of 8 (aligned accumulator split), Nc/Ns -> multiple
    # of 128 (lane dims of Q/cx/out and V; padded style tokens masked in-kernel).
    Ckp = _round_up(Ck, 128)
    Cp = _round_up(C, 8)
    Ncp = _round_up(Nc, 128)
    Nsp = _round_up(Ns, 128)

    q = jnp.pad(q, ((0, 0), (0, Ckp - Ck), (0, Ncp - Nc)))
    k = jnp.pad(k, ((0, 0), (0, Nsp - Ns), (0, Ckp - Ck)))
    v = jnp.pad(v, ((0, 0), (0, Cp - C), (0, Nsp - Ns)))
    cx = jnp.pad(cx_cm, ((0, 0), (0, 0), (0, Ncp - Nc)))           # stays f32

    # bf16 MXU inputs (f32 accumulation inside the kernel); f32 everywhere else.
    q = q.astype(compute_dtype)
    k = k.astype(compute_dtype)
    v = v.astype(compute_dtype)

    tq_cap, tk_cap, vmem_limit, n_tc, bf16_exp_ok = _tpu_config()
    if tq is None:
        tq = _choose_tile(Ncp, tq_cap)
        # Keep every TensorCore busy on dual-core parts (v7x) for B=1 inference.
        if n_tc > 1 and B * (Ncp // tq) < n_tc and Ncp >= n_tc * 128:
            tq = _choose_tile(Ncp, Ncp // n_tc)
    if tk is None:
        tk = _choose_tile(Nsp, tk_cap)
    assert Ncp % tq == 0 and tq % 128 == 0, "bad Nc tile"
    assert Nsp % tk == 0 and tk % 128 == 0, "bad Ns tile"

    exp_dtype = compute_dtype if bf16_exp_ok else jnp.float32
    kernel = functools.partial(_adaattn_flash_kernel,
                               ns_real=Ns, mask_ns=(Nsp != Ns), exp_dtype=exp_dtype)

    grid = (B, Ncp // tq, Nsp // tk)

    out_cm = pl.pallas_call(
        kernel,
        out_shape=jax.ShapeDtypeStruct((B, C, Ncp), jnp.float32),
        grid_spec=pltpu.PrefetchScalarGridSpec(
            num_scalar_prefetch=0,
            grid=grid,
            in_specs=[
                pl.BlockSpec((1, Ckp, tq), lambda b, i, j: (b, 0, i)),   # Q
                pl.BlockSpec((1, tk, Ckp), lambda b, i, j: (b, j, 0)),   # K
                pl.BlockSpec((1, Cp, tk), lambda b, i, j: (b, 0, j)),    # V
                pl.BlockSpec((1, C, tq), lambda b, i, j: (b, 0, i)),     # c_x
            ],
            out_specs=pl.BlockSpec((1, C, tq), lambda b, i, j: (b, 0, i)),
            scratch_shapes=[
                pltpu.VMEM((1, tq), jnp.float32),        # running max
                pltpu.VMEM((Cp, tq), jnp.float32),       # running mean numerator
                pltpu.VMEM((Cp + 8, tq), jnp.float32),   # running [E[v^2] ; denom]
            ],
        ),
        compiler_params=pltpu.CompilerParams(
            dimension_semantics=("parallel", "parallel", "arbitrary"),
            vmem_limit_bytes=vmem_limit),
    )(q, k, v, cx)

    # (B, C, Ncp) is already channel-major -> drop Nc padding, reshape to NCHW.
    return out_cm[:, :, :Nc].reshape(B, C, Hc, Wc)


def adaattn_reference(c_x, s_x, c_1x, s_1x, params):
    """Pure-JAX reference mirroring the PyTorch forward."""
    wf, bf, wg, bg, wh, bh = (params[k] for k in ("wf", "bf", "wg", "bg", "wh", "bh"))
    B, C, Hc, Wc = c_x.shape
    _, Ck, _, _ = c_1x.shape
    _, _, Hs, Ws = s_1x.shape

    def conv1x1(x, w, b):   # NCHW, w (out, in), b (out,)
        return jnp.einsum("oc,bchw->bohw", w, x) + b[None, :, None, None]

    F = conv1x1(c_1x, wf, bf)
    G = conv1x1(s_1x, wg, bg)
    H = conv1x1(s_x, wh, bh)

    G = G.reshape(B, Ck, Hs * Ws)                                    # (B, Ck, Ns)
    style_flat = jnp.transpose(H.reshape(B, C, Hs * Ws), (0, 2, 1))  # (B, Ns, C)
    Fm = jnp.transpose(F.reshape(B, Ck, Hc * Wc), (0, 2, 1))         # (B, Nc, Ck)
    S = jax.nn.softmax(jnp.einsum("bnk,bkm->bnm", Fm, G), axis=-1)
    mean = jnp.einsum("bnm,bmc->bnc", S, style_flat)
    std = jnp.sqrt(jnp.maximum(
        jnp.einsum("bnm,bmc->bnc", S, style_flat ** 2) - mean ** 2, 0.0))
    mean = jnp.transpose(mean, (0, 2, 1)).reshape(B, C, Hc, Wc)
    std = jnp.transpose(std, (0, 2, 1)).reshape(B, C, Hc, Wc)
    return std * c_x + mean


def init_params(key, in_planes, key_planes):
    ks = jax.random.split(key, 6)
    scale = 0.1
    return {
        "wf": scale * jax.random.normal(ks[0], (key_planes, key_planes), jnp.float32),
        "bf": scale * jax.random.normal(ks[1], (key_planes,), jnp.float32),
        "wg": scale * jax.random.normal(ks[2], (key_planes, key_planes), jnp.float32),
        "bg": scale * jax.random.normal(ks[3], (key_planes,), jnp.float32),
        "wh": scale * jax.random.normal(ks[4], (in_planes, in_planes), jnp.float32),
        "bh": scale * jax.random.normal(ks[5], (in_planes,), jnp.float32),
    }


if __name__ == "__main__":
    B, C, Ck = 2, 4, 4     # in_planes=4, key_planes=4
    key = jax.random.PRNGKey(0)
    k_cx, k_sx, k_c1x, k_s1x, k_p = jax.random.split(key, 5)
    params = init_params(k_p, C, Ck)

    # --- Case 1: 16x16 spatial (128-aligned token counts). ---
    H = W = 16
    c_x = jax.random.normal(k_cx, (B, C, H, W), jnp.float32)
    s_x = jax.random.normal(k_sx, (B, C, H, W), jnp.float32)
    c_1x = jax.random.normal(k_c1x, (B, Ck, H, W), jnp.float32)
    s_1x = jax.random.normal(k_s1x, (B, Ck, H, W), jnp.float32)
    ref = adaattn_reference(c_x, s_x, c_1x, s_1x, params)

    # f32 path with auto-picked tiles: tight correctness check.
    out_f32 = jax.block_until_ready(
        adaattn_forward(c_x, s_x, c_1x, s_1x, params, compute_dtype=jnp.float32))
    assert out_f32.shape == c_x.shape
    assert jnp.allclose(out_f32, ref, atol=1e-4, rtol=1e-4), "f32 mismatch vs reference"

    # bf16 fast path with explicit small tiles so the multi-step online-softmax
    # accumulation (grid over both Nc and Ns tiles) is exercised.
    out_bf16 = jax.block_until_ready(
        adaattn_forward(c_x, s_x, c_1x, s_1x, params,
                        compute_dtype=jnp.bfloat16, tq=128, tk=128))
    assert out_bf16.shape == c_x.shape
    assert jnp.allclose(out_bf16, ref, atol=2e-2, rtol=2e-2), "bf16 mismatch vs reference"

    # --- Case 2: non-128-divisible token counts (exercise Nc/Ns padding + mask). ---
    Hc2, Wc2, Hs2, Ws2 = 12, 12, 10, 10
    kc2, ks2, kc12, ks12 = jax.random.split(jax.random.PRNGKey(1), 4)
    c_x2 = jax.random.normal(kc2, (B, C, Hc2, Wc2), jnp.float32)
    s_x2 = jax.random.normal(ks2, (B, C, Hs2, Ws2), jnp.float32)
    c_1x2 = jax.random.normal(kc12, (B, Ck, Hc2, Wc2), jnp.float32)
    s_1x2 = jax.random.normal(ks12, (B, Ck, Hs2, Ws2), jnp.float32)
    ref2 = adaattn_reference(c_x2, s_x2, c_1x2, s_1x2, params)
    out2 = jax.block_until_ready(
        adaattn_forward(c_x2, s_x2, c_1x2, s_1x2, params, compute_dtype=jnp.float32))
    assert out2.shape == c_x2.shape
    assert jnp.allclose(out2, ref2, atol=1e-4, rtol=1e-4), "padded-shape mismatch vs reference"

    print("KERNEL_OK")
</pallas_src>

<mosaic_0001>
module attributes {stable_mosaic.version = 11 : i64} {
  func.func @_adaattn_flash_kernel(%arg0: i32, %arg1: i32, %arg2: i32, %arg3: memref<1x128x256xf32, #tpu.memory_space<vmem>>, %arg4: memref<1x256x128xf32, #tpu.memory_space<vmem>>, %arg5: memref<1x8x256xf32, #tpu.memory_space<vmem>>, %arg6: memref<1x4x256xf32, #tpu.memory_space<vmem>>, %arg7: memref<1x4x256xf32, #tpu.memory_space<vmem>>, %arg8: memref<1x256xf32, #tpu.memory_space<vmem>>, %arg9: memref<8x256xf32, #tpu.memory_space<vmem>>, %arg10: memref<16x256xf32, #tpu.memory_space<vmem>>) attributes {dimension_semantics = [#tpu.dimension_semantics<parallel>, #tpu.dimension_semantics<parallel>, #tpu.dimension_semantics<arbitrary>], iteration_bounds = array<i64: 2, 1, 1>, scalar_prefetch = 0 : i64, scratch_operands = 3 : i64, tpu.core_type = #tpu.core_type<tc>, window_params = [{transform_indices = @transform_0, window_bounds = array<i64: 1, 128, 256>}, {transform_indices = @transform_1, window_bounds = array<i64: 1, 256, 128>}, {transform_indices = @transform_2, window_bounds = array<i64: 1, 8, 256>}, {transform_indices = @transform_3, window_bounds = array<i64: 1, 4, 256>}, {transform_indices = @transform_4, window_bounds = array<i64: 1, 4, 256>}]} {
    %c0_i32 = arith.constant 0 : i32
    %0 = arith.cmpi eq, %arg2, %c0_i32 : i32
    %1 = arith.extui %0 : i1 to i32
    %c0_i32_0 = arith.constant 0 : i32
    %2 = arith.cmpi ne, %1, %c0_i32_0 : i32
    scf.if %2 {
      %cst_27 = arith.constant 0xFF800000 : f32
      %38 = vector.broadcast %cst_27 : f32 to vector<1x256xf32>
      %c0_28 = arith.constant 0 : index
      %c0_29 = arith.constant 0 : index
      %39 = vector.load %arg8[%c0_28, %c0_29] : memref<1x256xf32, #tpu.memory_space<vmem>>, vector<1x256xf32>
      tpu.vector_store %arg8[%c0_28, %c0_29], %38 {strides = array<i32>} : memref<1x256xf32, #tpu.memory_space<vmem>>, vector<1x256xf32>,
      %cst_30 = arith.constant 0.000000e+00 : f32
      %40 = vector.broadcast %cst_30 : f32 to vector<8x256xf32>
      %c0_31 = arith.constant 0 : index
      %c0_32 = arith.constant 0 : index
      %41 = vector.load %arg9[%c0_31, %c0_32] : memref<8x256xf32, #tpu.memory_space<vmem>>, vector<8x256xf32>
      tpu.vector_store %arg9[%c0_31, %c0_32], %40 {strides = array<i32>} : memref<8x256xf32, #tpu.memory_space<vmem>>, vector<8x256xf32>,
      %cst_33 = arith.constant 0.000000e+00 : f32
      %42 = vector.broadcast %cst_33 : f32 to vector<16x256xf32>
      %c0_34 = arith.constant 0 : index
      %c0_35 = arith.constant 0 : index
      %43 = vector.load %arg10[%c0_34, %c0_35] : memref<16x256xf32, #tpu.memory_space<vmem>>, vector<16x256xf32>
      tpu.vector_store %arg10[%c0_34, %c0_35], %42 {strides = array<i32>} : memref<16x256xf32, #tpu.memory_space<vmem>>, vector<16x256xf32>,
    } else {
    }
    %c0 = arith.constant 0 : index
    %c0_1 = arith.constant 0 : index
    %c0_2 = arith.constant 0 : index
    %3 = vector.load %arg3[%c0, %c0_1, %c0_2] : memref<1x128x256xf32, #tpu.memory_space<vmem>>, vector<1x128x256xf32>
    %4 = vector.shape_cast %3 : vector<1x128x256xf32> to vector<128x256xf32>
    %c0_3 = arith.constant 0 : index
    %c0_4 = arith.constant 0 : index
    %c0_5 = arith.constant 0 : index
    %5 = vector.load %arg4[%c0_3, %c0_4, %c0_5] : memref<1x256x128xf32, #tpu.memory_space<vmem>>, vector<1x256x128xf32>
    %6 = vector.shape_cast %5 : vector<1x256x128xf32> to vector<256x128xf32>
    %c0_6 = arith.constant 0 : index
    %c0_7 = arith.constant 0 : index
    %c0_8 = arith.constant 0 : index
    %7 = vector.load %arg5[%c0_6, %c0_7, %c0_8] : memref<1x8x256xf32, #tpu.memory_space<vmem>>, vector<1x8x256xf32>
    %8 = vector.shape_cast %7 : vector<1x8x256xf32> to vector<8x256xf32>
    %cst = arith.constant dense<0.000000e+00> : vector<256x256xf32>
    %9 = tpu.matmul %6, %4, %cst {dimension_numbers = #tpu.dot_dimension_numbers<[1], [0], [0], [1], [0, 0, 1, 1], [], []>} : vector<256x128xf32>, vector<128x256xf32>, vector<256x256xf32> -> vector<256x256xf32>
    %c0_9 = arith.constant 0 : index
    %c0_10 = arith.constant 0 : index
    %10 = vector.load %arg8[%c0_9, %c0_10] : memref<1x256xf32, #tpu.memory_space<vmem>>, vector<1x256xf32>
    %cst_11 = arith.constant dense<0xFF800000> : vector<256xf32>
    %11 = vector.multi_reduction <maximumf>, %9, %cst_11 [0] : vector<256x256xf32> to vector<256xf32>
    %12 = vector.shape_cast %11 : vector<256xf32> to vector<1x256xf32>
    %13 = arith.maximumf %10, %12 : vector<1x256xf32>
    %14 = arith.subf %10, %13 : vector<1x256xf32>
    %15 = math.exp %14 : vector<1x256xf32>
    %16 = vector.broadcast %13 : vector<1x256xf32> to vector<256x256xf32>
    %17 = arith.subf %9, %16 : vector<256x256xf32>
    %18 = math.exp %17 : vector<256x256xf32>
    %cst_12 = arith.constant 1.000000e+00 : f32
    %19 = vector.broadcast %cst_12 : f32 to vector<8x256xf32>
    %20 = arith.mulf %8, %8 : vector<8x256xf32>
    %21 = tpu.concatenate %20, %19 in 0 : vector<8x256xf32>, vector<8x256xf32> -> vector<16x256xf32>
    %cst_13 = arith.constant dense<0.000000e+00> : vector<8x256xf32>
    %22 = tpu.matmul %8, %18, %cst_13 {dimension_numbers = #tpu.dot_dimension_numbers<[1], [0], [0], [1], [0, 0, 1, 1], [], []>} : vector<8x256xf32>, vector<256x256xf32>, vector<8x256xf32> -> vector<8x256xf32>
    %cst_14 = arith.constant dense<0.000000e+00> : vector<16x256xf32>
    %23 = tpu.matmul %21, %18, %cst_14 {dimension_numbers = #tpu.dot_dimension_numbers<[1], [0], [0], [1], [0, 0, 1, 1], [], []>} : vector<16x256xf32>, vector<256x256xf32>, vector<16x256xf32> -> vector<16x256xf32>
    %c0_15 = arith.constant 0 : index
    %c0_16 = arith.constant 0 : index
    %24 = vector.load %arg9[%c0_15, %c0_16] : memref<8x256xf32, #tpu.memory_space<vmem>>, vector<8x256xf32>
    %25 = vector.broadcast %15 : vector<1x256xf32> to vector<8x256xf32>
    %26 = arith.mulf %25, %24 : vector<8x256xf32>
    %27 = arith.addf %26, %22 : vector<8x256xf32>
    %c0_17 = arith.constant 0 : index
    %c0_18 = arith.constant 0 : index
    %28 = vector.load %arg9[%c0_17, %c0_18] : memref<8x256xf32, #tpu.memory_space<vmem>>, vector<8x256xf32>
    tpu.vector_store %arg9[%c0_17, %c0_18], %27 {strides = array<i32>} : memref<8x256xf32, #tpu.memory_space<vmem>>, vector<8x256xf32>,
    %c0_19 = arith.constant 0 : index
    %c0_20 = arith.constant 0 : index
    %29 = vector.load %arg10[%c0_19, %c0_20] : memref<16x256xf32, #tpu.memory_space<vmem>>, vector<16x256xf32>
    %30 = vector.broadcast %15 : vector<1x256xf32> to vector<16x256xf32>
    %31 = arith.mulf %30, %29 : vector<16x256xf32>
    %32 = arith.addf %31, %23 : vector<16x256xf32>
    %c0_21 = arith.constant 0 : index
    %c0_22 = arith.constant 0 : index
    %33 = vector.load %arg10[%c0_21, %c0_22] : memref<16x256xf32, #tpu.memory_space<vmem>>, vector<16x256xf32>
    tpu.vector_store %arg10[%c0_21, %c0_22], %32 {strides = array<i32>} : memref<16x256xf32, #tpu.memory_space<vmem>>, vector<16x256xf32>,
    %c0_23 = arith.constant 0 : index
    %c0_24 = arith.constant 0 : index
    %34 = vector.load %arg8[%c0_23, %c0_24] : memref<1x256xf32, #tpu.memory_space<vmem>>, vector<1x256xf32>
    tpu.vector_store %arg8[%c0_23, %c0_24], %13 {strides = array<i32>} : memref<1x256xf32, #tpu.memory_space<vmem>>, vector<1x256xf32>,
    %c0_i32_25 = arith.constant 0 : i32
    %35 = arith.cmpi eq, %arg2, %c0_i32_25 : i32
    %36 = arith.extui %35 : i1 to i32
    %c0_i32_26 = arith.constant 0 : i32
    %37 = arith.cmpi ne, %36, %c0_i32_26 : i32
    scf.if %37 {
      %c8 = arith.constant 8 : index
      %c0_27 = arith.constant 0 : index
      %38 = vector.load %arg10[%c8, %c0_27] : memref<16x256xf32, #tpu.memory_space<vmem>>, vector<1x256xf32>
      %39 = tpu.reciprocal %38 : vector<1x256xf32> -> vector<1x256xf32>
      %c0_28 = arith.constant 0 : index
      %c0_29 = arith.constant 0 : index
      %40 = vector.load %arg9[%c0_28, %c0_29] : memref<8x256xf32, #tpu.memory_space<vmem>>, vector<4x256xf32>
      %41 = vector.broadcast %39 : vector<1x256xf32> to vector<4x256xf32>
      %42 = arith.mulf %40, %41 : vector<4x256xf32>
      %c0_30 = arith.constant 0 : index
      %c0_31 = arith.constant 0 : index
      %43 = vector.load %arg10[%c0_30, %c0_31] : memref<16x256xf32, #tpu.memory_space<vmem>>, vector<4x256xf32>
      %44 = vector.broadcast %39 : vector<1x256xf32> to vector<4x256xf32>
      %45 = arith.mulf %43, %44 : vector<4x256xf32>
      %46 = arith.mulf %42, %42 : vector<4x256xf32>
      %47 = arith.subf %45, %46 : vector<4x256xf32>
      %cst_32 = arith.constant 0.000000e+00 : f32
      %48 = vector.broadcast %cst_32 : f32 to vector<4x256xf32>
      %49 = arith.maximumf %47, %48 : vector<4x256xf32>
      %50 = math.sqrt %49 : vector<4x256xf32>
      %c0_33 = arith.constant 0 : index
      %c0_34 = arith.constant 0 : index
      %c0_35 = arith.constant 0 : index
      %51 = vector.load %arg6[%c0_33, %c0_34, %c0_35] : memref<1x4x256xf32, #tpu.memory_space<vmem>>, vector<1x4x256xf32>
      %52 = vector.shape_cast %51 : vector<1x4x256xf32> to vector<4x256xf32>
      %53 = arith.mulf %50, %52 : vector<4x256xf32>
      %54 = arith.addf %53, %42 : vector<4x256xf32>
      %c0_36 = arith.constant 0 : index
      %c0_37 = arith.constant 0 : index
      %c0_38 = arith.constant 0 : index
      %55 = vector.load %arg7[%c0_36, %c0_37, %c0_38] : memref<1x4x256xf32, #tpu.memory_space<vmem>>, vector<1x4x256xf32>
      %56 = vector.shape_cast %55 : vector<1x4x256xf32> to vector<4x256xf32>
      %57 = vector.shape_cast %54 : vector<4x256xf32> to vector<1x4x256xf32>
      tpu.vector_store %arg7[%c0_36, %c0_37, %c0_38], %57 {strides = array<i32>} : memref<1x4x256xf32, #tpu.memory_space<vmem>>, vector<1x4x256xf32>,
    } else {
    }
    return
  }
  func.func @transform_0(%arg0: i32, %arg1: i32, %arg2: i32) -> (i32, i32, i32) {
    %c0_i32 = arith.constant 0 : i32
    %c0_i32_0 = arith.constant 0 : i32
    return %arg0, %c0_i32, %arg1 : i32, i32, i32
  }
  func.func @transform_1(%arg0: i32, %arg1: i32, %arg2: i32) -> (i32, i32, i32) {
    %c0_i32 = arith.constant 0 : i32
    %c0_i32_0 = arith.constant 0 : i32
    return %arg0, %arg2, %c0_i32 : i32, i32, i32
  }
  func.func @transform_2(%arg0: i32, %arg1: i32, %arg2: i32) -> (i32, i32, i32) {
    %c0_i32 = arith.constant 0 : i32
    %c0_i32_0 = arith.constant 0 : i32
    return %arg0, %c0_i32, %arg2 : i32, i32, i32
  }
  func.func @transform_3(%arg0: i32, %arg1: i32, %arg2: i32) -> (i32, i32, i32) {
    %c0_i32 = arith.constant 0 : i32
    %c0_i32_0 = arith.constant 0 : i32
    return %arg0, %c0_i32, %arg1 : i32, i32, i32
  }
  func.func @transform_4(%arg0: i32, %arg1: i32, %arg2: i32) -> (i32, i32, i32) {
    %c0_i32 = arith.constant 0 : i32
    %c0_i32_0 = arith.constant 0 : i32
    return %arg0, %c0_i32, %arg1 : i32, i32, i32
  }
}

</mosaic_0001>

<llo_original>
// kernel: tpu_custom_call.1
$region0: #{tpu_custom_call.1}
  #allocation0 [shape = 'u32[]', space=smem, size = 0x4, offset = 0x4, fixed_abs, tag = 'smem constant byte address 0x4 - core index']
  #allocation1 [shape = 'u32[144,128]{1,0:T(1,128)}', space=vmem, size = 0x12000, scoped, tag = 'internal scratch']
  #allocation2 [shape = 'f32[1,256]{1,0:T(1,128)}', space=vmem, size = 0x400, scoped, tag = 'scratch operand']
  #allocation3 [shape = 'f32[8,256]{1,0:T(8,128)}', space=vmem, size = 0x2000, scoped, tag = 'scratch operand']
  #allocation4 [shape = 'f32[16,256]{1,0:T(8,128)}', space=vmem, size = 0x4000, scoped, tag = 'scratch operand']
  %s0 = inlined_call_operand.hbm [shape: f32[2,128,256], index: 0, kind: input, shape index: {}]
  %s1 = inlined_call_operand.hbm [shape: f32[2,256,128], index: 1, kind: input, shape index: {}]
  %s2 = inlined_call_operand.hbm [shape: f32[2,8,256], index: 2, kind: input, shape index: {}]
  %s3 = inlined_call_operand.hbm [shape: f32[2,4,256], index: 3, kind: input, shape index: {}]
  %s4 = inlined_call_operand.hbm [shape: f32[2,4,256], index: 4, kind: output, shape index: {}]
  %s5 = sld [smem:[#allocation0]]
  $region73: #{tpu_custom_call.1} parent=0
    _
  %s7 = ssub.s32 1, %s5
  %s8 = scalar_select 0, %s7, %s5
  $region1: #{tpu_custom_call.1} parent=0
    #allocation5 [shape = 'u8[262144]{0}', space=vmem, size = 0x40000, scoped, tag = 'input window, operand 0']
    #allocation6 [shape = 's32[2]{0}', space=sflag, size = 0x8, scoped, tag = 'scoped memory for tpu_custom_call.1']
    #allocation7 [shape = 's32[2]{0}', space=sflag, size = 0x8, scoped, tag = 'scoped memory for tpu_custom_call.1']
    #allocation8 [shape = 'u8[262144]{0}', space=vmem, size = 0x40000, scoped, tag = 'input window, operand 1']
    #allocation9 [shape = 's32[2]{0}', space=sflag, size = 0x8, scoped, tag = 'scoped memory for tpu_custom_call.1']
    #allocation10 [shape = 'u8[16384]{0}', space=vmem, size = 0x4000, scoped, tag = 'input window, operand 2']
    #allocation11 [shape = 'u8[8192]{0}', space=vmem, size = 0x2000, scoped, tag = 'input window, operand 3']
    #allocation12 [shape = 's32[2]{0}', space=sflag, size = 0x8, scoped, tag = 'scoped memory for tpu_custom_call.1']
    #allocation13 [shape = 'u8[8192]{0}', space=vmem, size = 0x2000, scoped, tag = 'output window, operand 0']
    %9 = vsyncpa [#allocation6], 0
    %s10 = scalar_lea.sflag [#allocation6], 1
    %11 = vsyncpa %s10, 0
    %12 = vsyncpa [#allocation9], 0
    %s13 = scalar_lea.sflag [#allocation9], 1
    %14 = vsyncpa %s13, 0
    %15 = vsyncpa [#allocation12], 0
    %s16 = scalar_lea.sflag [#allocation12], 1
    %17 = vsyncpa %s16, 0
    %18 = vsyncpa [#allocation7], 0
    %s19 = scalar_lea.sflag [#allocation7], 1
    %20 = vsyncpa %s19, 0
    loop: start=0, step=1, limit=4
    $region2: #{tpu_custom_call.1} parent=1 // loop_pre_header
      _
    $region3: #{tpu_custom_call.1} parent=1 // loop_header
      %s22 = sphi 0, %s26
      %p23 = scmp.ge.s32.totalorder %s22, 4
      %s29 = sphi 0, %s48
      %s30 = sphi 0, %s44
      %s31 = sphi 0, %s40
      %s32 = sphi 0, %s29
      %s33 = sphi 0, %s30
      %s34 = sphi 0, %s31
      %s35 = sphi 0, %s32
      %s36 = sphi 0, %s33
      %s37 = sphi 0, %s34
      %s53 = sphi 0, %s55
      %s56 = sphi 0, %s53
      %s57 = sphi 0, %s56
      %s73 = sphi 0, %s57
      %s81 = sphi 0, %s83
      %s84 = sphi 0, %s81
      %s85 = sphi 0, %s84
      %s101 = sphi 0, %s85
      %s109 = sphi 0, %s111
      %s112 = sphi 0, %s109
      %s113 = sphi 0, %s112
      %s129 = sphi 0, %s113
      %s137 = sphi 0, %s139
      %s140 = sphi 0, %s137
      %s141 = sphi 0, %s140
      %s157 = sphi 0, %s141
      %s165 = sphi 0, %s167
      %s168 = sphi 0, %s165
      %s169 = sphi 0, %s168
      %s185 = sphi 0, %s169
    $region4: #{tpu_custom_call.1} parent=1 // loop_header_branch
      %25 = sbr.rel (%p23) target = $region8
    $region5: #{tpu_custom_call.1} parent=1 // loop_body
      %s27 = ssub.s32 %s22, 1
      %s28 = ssub.s32 %s22, 2
      %s38 = sadd.s32 1, %s31
      %p39 = scmp.ge.s32.totalorder %s38, 1
      %s40 = scalar_select %p39, 0, %s38
      %s41 = sadd.s32 1, %s30
      %s42 = scalar_select %p39, %s41, %s30
      %p43 = scmp.ge.s32.totalorder %s42, 1
      %s44 = scalar_select %p43, 0, %s42
      %s45 = sadd.s32 1, %s29
      %s46 = scalar_select %p43, %s45, %s29
      %p47 = scmp.ge.s32.totalorder %s46, 2
      %s48 = scalar_select %p47, 0, %s46
      %s49 = ssub.s32 %s29, %s48
      %s50 = ssub.s32 %s30, %s44
      %s51 = sor.u32 %s49, %s50
      %p52 = scmp.eq.s32.totalorder %s51, 0
      %s54 = sadd.s32 %s53, 1
      %s55 = scalar_select %p52, %s53, %s54
      %p58 = pneg %p52
      %p59 = scmp.eq.s32.totalorder %s22, 1
      %p60 = por %p58, %p59
      %p61 = scmp.ne.s32.totalorder %s53, %s56
      %p62 = scmp.eq.s32.totalorder %s22, 0
      %p63 = por %p61, %p62
      %p64 = scmp.ne.s32.totalorder %s53, %s56
      %p65 = scmp.eq.s32.totalorder %s27, 1
      %p66 = por %p64, %p65
      %p67 = scmp.ne.s32.totalorder %s56, %s57
      %p68 = scmp.eq.s32.totalorder %s27, 0
      %p69 = por %p67, %p68
      %p70 = scmp.ne.s32.totalorder %s56, %s57
      %p71 = scmp.eq.s32.totalorder %s28, 1
      %p72 = por %p70, %p71
      %p74 = scmp.ne.s32.totalorder %s57, %s73
      %p75 = scmp.eq.s32.totalorder %s28, 0
      %p76 = por %p74, %p75
      %s77 = ssub.s32 %s29, %s48
      %s78 = ssub.s32 %s31, %s40
      %s79 = sor.u32 %s77, %s78
      %p80 = scmp.eq.s32.totalorder %s79, 0
      %s82 = sadd.s32 %s81, 1
      %s83 = scalar_select %p80, %s81, %s82
      %p86 = pneg %p80
      %p87 = scmp.eq.s32.totalorder %s22, 1
      %p88 = por %p86, %p87
      %p89 = scmp.ne.s32.totalorder %s81, %s84
      %p90 = scmp.eq.s32.totalorder %s22, 0
      %p91 = por %p89, %p90
      %p92 = scmp.ne.s32.totalorder %s81, %s84
      %p93 = scmp.eq.s32.totalorder %s27, 1
      %p94 = por %p92, %p93
      %p95 = scmp.ne.s32.totalorder %s84, %s85
      %p96 = scmp.eq.s32.totalorder %s27, 0
      %p97 = por %p95, %p96
      %p98 = scmp.ne.s32.totalorder %s84, %s85
      %p99 = scmp.eq.s32.totalorder %s28, 1
      %p100 = por %p98, %p99
      %p102 = scmp.ne.s32.totalorder %s85, %s101
      %p103 = scmp.eq.s32.totalorder %s28, 0
      %p104 = por %p102, %p103
      %s105 = ssub.s32 %s29, %s48
      %s106 = ssub.s32 %s31, %s40
      %s107 = sor.u32 %s105, %s106
      %p108 = scmp.eq.s32.totalorder %s107, 0
      %s110 = sadd.s32 %s109, 1
      %s111 = scalar_select %p108, %s109, %s110
      %p114 = pneg %p108
      %p115 = scmp.eq.s32.totalorder %s22, 1
      %p116 = por %p114, %p115
      %p117 = scmp.ne.s32.totalorder %s109, %s112
      %p118 = scmp.eq.s32.totalorder %s22, 0
      %p119 = por %p117, %p118
      %p120 = scmp.ne.s32.totalorder %s109, %s112
      %p121 = scmp.eq.s32.totalorder %s27, 1
      %p122 = por %p120, %p121
      %p123 = scmp.ne.s32.totalorder %s112, %s113
      %p124 = scmp.eq.s32.totalorder %s27, 0
      %p125 = por %p123, %p124
      %p126 = scmp.ne.s32.totalorder %s112, %s113
      %p127 = scmp.eq.s32.totalorder %s28, 1
      %p128 = por %p126, %p127
      %p130 = scmp.ne.s32.totalorder %s113, %s129
      %p131 = scmp.eq.s32.totalorder %s28, 0
      %p132 = por %p130, %p131
      %s133 = ssub.s32 %s29, %s48
      %s134 = ssub.s32 %s30, %s44
      %s135 = sor.u32 %s133, %s134
      %p136 = scmp.eq.s32.totalorder %s135, 0
      %s138 = sadd.s32 %s137, 1
      %s139 = scalar_select %p136, %s137, %s138
      %p142 = pneg %p136
      %p143 = scmp.eq.s32.totalorder %s22, 1
      %p144 = por %p142, %p143
      %p145 = scmp.ne.s32.totalorder %s137, %s140
      %p146 = scmp.eq.s32.totalorder %s22, 0
      %p147 = por %p145, %p146
      %p148 = scmp.ne.s32.totalorder %s137, %s140
      %p149 = scmp.eq.s32.totalorder %s27, 1
      %p150 = por %p148, %p149
      %p151 = scmp.ne.s32.totalorder %s140, %s141
      %p152 = scmp.eq.s32.totalorder %s27, 0
      %p153 = por %p151, %p152
      %p154 = scmp.ne.s32.totalorder %s140, %s141
      %p155 = scmp.eq.s32.totalorder %s28, 1
      %p156 = por %p154, %p155
      %p158 = scmp.ne.s32.totalorder %s141, %s157
      %p159 = scmp.eq.s32.totalorder %s28, 0
      %p160 = por %p158, %p159
      %s161 = ssub.s32 %s29, %s48
      %s162 = ssub.s32 %s30, %s44
      %s163 = sor.u32 %s161, %s162
      %p164 = scmp.eq.s32.totalorder %s163, 0
      %s166 = sadd.s32 %s165, 1
      %s167 = scalar_select %p164, %s165, %s166
      %p170 = pneg %p164
      %p171 = scmp.eq.s32.totalorder %s22, 1
      %p172 = por %p170, %p171
      %p173 = scmp.ne.s32.totalorder %s165, %s168
      %p174 = scmp.eq.s32.totalorder %s22, 0
      %p175 = por %p173, %p174
      %p176 = scmp.ne.s32.totalorder %s165, %s168
      %p177 = scmp.eq.s32.totalorder %s27, 1
      %p178 = por %p176, %p177
      %p179 = scmp.ne.s32.totalorder %s168, %s169
      %p180 = scmp.eq.s32.totalorder %s27, 0
      %p181 = por %p179, %p180
      %p182 = scmp.ne.s32.totalorder %s168, %s169
      %p183 = scmp.eq.s32.totalorder %s28, 1
      %p184 = por %p182, %p183
      %p186 = scmp.ne.s32.totalorder %s169, %s185
      %p187 = scmp.eq.s32.totalorder %s28, 0
      %p188 = por %p186, %p187
      %p189 = scmp.le.s32.totalorder 1, %s22
      %p190 = scmp.lt.s32.totalorder %s22, 3
      %p191 = pnand %p189, %p190
      %p192 = pneg %p191
      // Predicated region
      $region9: #{tpu_custom_call.1} parent=5 // pred_check
        _
      $region10: #{tpu_custom_call.1} parent=5 // pred_check_branch
        %194 = sbr.rel (%p191) target = $region12
      $region11: #{tpu_custom_call.1} parent=5 // pred_region
        %s195 = ssub.s32 %s22, 1
      $region12: #{tpu_custom_call.1} parent=5 // pred_fallthru
        _
      %p196 = scmp.lt.s32.totalorder %s22, 2
      // Predicated region
      $region13: #{tpu_custom_call.1} parent=5 // pred_check
        %p197 = pneg %p196
      $region14: #{tpu_custom_call.1} parent=5 // pred_check_branch
        %199 = sbr.rel (%p197) target = $region16
      $region15: #{tpu_custom_call.1} parent=5 // pred_region
        // Predicated region
        $region17: #{tpu_custom_call.1} parent=15 // pred_check
          %p200 = pneg %p63
        $region18: #{tpu_custom_call.1} parent=15 // pred_check_branch
          %202 = sbr.rel (%p200) target = $region20
        $region19: #{tpu_custom_call.1} parent=15 // pred_region
          %s203 = sand.u32 %s53, 1
          %s204 = scalar_lea.sflag [#allocation6], %s203
          %s205 = sand.u32 %s53, 1
          %s206 = smul.addr %s205, 256
          %s207 = scalar_lea.vmem [#allocation5], %s206
          %s208 = smul.u32 2, %s30
          %s210 = ssub.s32 4096, 4096
          %211 = vsyncadd %s204, %s210
          %s212 = smul.addr %s29, 32
          %s213 = sadd.s32 %s208, %s212
          %s214 = smul.addr %s213, 128
          %s215 = scalar_lea.hbm %s0, %s214
          %s216 = sshll.u32 %s207, 4
          %s217 = int_to_ptr.vmem [resolvable:$true] %s216
          %222 = dma.hbm_to_vmem [thread:$0]  %s215, 4096, %s217, %s204, 256, 256, 16
        $region20: #{tpu_custom_call.1} parent=15 // pred_fallthru
          _
        // Predicated region
        $region21: #{tpu_custom_call.1} parent=15 // pred_check
          %p223 = pneg %p91
        $region22: #{tpu_custom_call.1} parent=15 // pred_check_branch
          %225 = sbr.rel (%p223) target = $region24
        $region23: #{tpu_custom_call.1} parent=15 // pred_region
          %s226 = sand.u32 %s22, 1
          %s227 = scalar_lea.sflag [#allocation9], %s226
          %s228 = sand.u32 %s81, 1
          %s229 = smul.addr %s228, 256
          %s230 = scalar_lea.vmem [#allocation8], %s229
          %s231 = smul.u32 32, %s31
          %s233 = ssub.s32 4096, 4096
          %234 = vsyncadd %s227, %s233
          %s235 = smul.addr %s29, 32
          %s236 = sadd.s32 %s231, %s235
          %s237 = smul.addr %s236, 128
          %s238 = scalar_lea.hbm %s1, %s237
          %s239 = sshll.u32 %s230, 4
          %s240 = int_to_ptr.vmem [resolvable:$true] %s239
          %245 = dma.hbm_to_vmem [thread:$0]  %s238, 4096, %s240, %s227, 128, 128, 8
        $region24: #{tpu_custom_call.1} parent=15 // pred_fallthru
          _
        // Predicated region
        $region25: #{tpu_custom_call.1} parent=15 // pred_check
          %p246 = pneg %p119
        $region26: #{tpu_custom_call.1} parent=15 // pred_check_branch
          %248 = sbr.rel (%p246) target = $region28
        $region27: #{tpu_custom_call.1} parent=15 // pred_region
          %s249 = sand.u32 %s22, 1
          %s250 = scalar_lea.sflag [#allocation9], %s249
          %s251 = sand.u32 %s109, 1
          %s252 = smul.addr %s251, 16
          %s253 = scalar_lea.vmem [#allocation10], %s252
          %s254 = smul.u32 2, %s31
          %s256 = ssub.s32 256, 256
          %257 = vsyncadd %s250, %s256
          %s258 = smul.addr %s29, 2
          %s259 = sadd.s32 %s254, %s258
          %s260 = smul.addr %s259, 128
          %s261 = scalar_lea.hbm %s2, %s260
          %s263 = sshll.u32 %s253, 4
          %s264 = int_to_ptr.vmem [resolvable:$true] %s263
          %266 = dma.hbm_to_vmem [thread:$0]  %s261, 256, %s264, %s250
        $region28: #{tpu_custom_call.1} parent=15 // pred_fallthru
          _
        // Predicated region
        $region29: #{tpu_custom_call.1} parent=15 // pred_check
          %p267 = pneg %p147
        $region30: #{tpu_custom_call.1} parent=15 // pred_check_branch
          %269 = sbr.rel (%p267) target = $region32
        $region31: #{tpu_custom_call.1} parent=15 // pred_region
          %s270 = sand.u32 %s137, 1
          %s271 = scalar_lea.sflag [#allocation12], %s270
          %s272 = sand.u32 %s137, 1
          %s273 = smul.addr %s272, 8
          %s274 = scalar_lea.vmem [#allocation11], %s273
          %s275 = smul.u32 2, %s30
          %s277 = ssub.s32 128, 128
          %278 = vsyncadd %s271, %s277
          %s279 = smul.addr %s29, 2
          %s280 = sadd.s32 %s275, %s279
          %s281 = smul.addr %s280, 64
          %s282 = scalar_lea.hbm %s3, %s281
          %s284 = sshll.u32 %s274, 4
          %s285 = int_to_ptr.vmem [resolvable:$true] %s284
          %287 = dma.hbm_to_vmem [thread:$0]  %s282, 128, %s285, %s271
        $region32: #{tpu_custom_call.1} parent=15 // pred_fallthru
          _
      $region16: #{tpu_custom_call.1} parent=5 // pred_fallthru
        _
      %p288 = scmp.le.s32.totalorder 1, %s22
      %p289 = scmp.lt.s32.totalorder %s22, 3
      %p290 = pnand %p288, %p289
      %p291 = pneg %p290
      // Predicated region
      $region33: #{tpu_custom_call.1} parent=5 // pred_check
        _
      $region34: #{tpu_custom_call.1} parent=5 // pred_check_branch
        %293 = sbr.rel (%p290) target = $region36
      $region35: #{tpu_custom_call.1} parent=5 // pred_region
        %s294 = ssub.s32 %s22, 1
        %s295 = sand.u32 %s56, 1
        %s296 = scalar_lea.sflag [#allocation6], %s295
        %s297 = sand.u32 %s56, 1
        %s298 = smul.addr %s297, 256
        %s299 = scalar_lea.vmem [#allocation5], %s298
        // Predicated region
        $region37: #{tpu_custom_call.1} parent=35 // pred_check
          %p300 = pneg %p69
        $region38: #{tpu_custom_call.1} parent=35 // pred_check_branch
          %302 = sbr.rel (%p300) target = $region40
        $region39: #{tpu_custom_call.1} parent=35 // pred_region
          %303 = dma.done %s296, 4096
        $region40: #{tpu_custom_call.1} parent=35 // pred_fallthru
          _
        %s304 = sand.u32 %s27, 1
        %s305 = scalar_lea.sflag [#allocation9], %s304
        %s306 = sand.u32 %s84, 1
        %s307 = smul.addr %s306, 256
        %s308 = scalar_lea.vmem [#allocation8], %s307
        // Predicated region
        $region41: #{tpu_custom_call.1} parent=35 // pred_check
          %p309 = pneg %p97
        $region42: #{tpu_custom_call.1} parent=35 // pred_check_branch
          %311 = sbr.rel (%p309) target = $region44
        $region43: #{tpu_custom_call.1} parent=35 // pred_region
          %312 = dma.done %s305, 4096
        $region44: #{tpu_custom_call.1} parent=35 // pred_fallthru
          _
        %s313 = sand.u32 %s27, 1
        %s314 = scalar_lea.sflag [#allocation9], %s313
        %s315 = sand.u32 %s112, 1
        %s316 = smul.addr %s315, 16
        %s317 = scalar_lea.vmem [#allocation10], %s316
        // Predicated region
        $region45: #{tpu_custom_call.1} parent=35 // pred_check
          %p318 = pneg %p125
        $region46: #{tpu_custom_call.1} parent=35 // pred_check_branch
          %320 = sbr.rel (%p318) target = $region48
        $region47: #{tpu_custom_call.1} parent=35 // pred_region
          %321 = dma.done %s314, 256
        $region48: #{tpu_custom_call.1} parent=35 // pred_fallthru
          _
        %s322 = sand.u32 %s140, 1
        %s323 = scalar_lea.sflag [#allocation12], %s322
        %s324 = sand.u32 %s140, 1
        %s325 = smul.addr %s324, 8
        %s326 = scalar_lea.vmem [#allocation11], %s325
        // Predicated region
        $region49: #{tpu_custom_call.1} parent=35 // pred_check
          %p327 = pneg %p153
        $region50: #{tpu_custom_call.1} parent=35 // pred_check_branch
          %329 = sbr.rel (%p327) target = $region52
        $region51: #{tpu_custom_call.1} parent=35 // pred_region
          %330 = dma.done %s323, 128
        $region52: #{tpu_custom_call.1} parent=35 // pred_fallthru
          _
        %s331 = sand.u32 %s56, 1
        %s332 = scalar_lea.sflag [#allocation6], %s331
        %s333 = sand.u32 %s56, 1
        %s334 = smul.addr %s333, 256
        %s335 = scalar_lea.vmem [#allocation5], %s334
        %p336 = pneg %p69
        %p337 = pneg %p66
        %s338 = sand.u32 %s27, 1
        %s339 = scalar_lea.sflag [#allocation9], %s338
        %s340 = sand.u32 %s84, 1
        %s341 = smul.addr %s340, 256
        %s342 = scalar_lea.vmem [#allocation8], %s341
        %p343 = pneg %p97
        %p344 = pneg %p94
        %s345 = sand.u32 %s27, 1
        %s346 = scalar_lea.sflag [#allocation9], %s345
        %s347 = sand.u32 %s112, 1
        %s348 = smul.addr %s347, 16
        %s349 = scalar_lea.vmem [#allocation10], %s348
        %p350 = pneg %p125
        %p351 = pneg %p122
        %s352 = sand.u32 %s140, 1
        %s353 = scalar_lea.sflag [#allocation12], %s352
        %s354 = sand.u32 %s140, 1
        %s355 = smul.addr %s354, 8
        %s356 = scalar_lea.vmem [#allocation11], %s355
        %p357 = pneg %p153
        %p358 = pneg %p150
        %p359 = pneg %p181
        %p360 = pneg %p178
        %s361 = sand.u32 %s168, 1
        %s362 = scalar_lea.sflag [#allocation7], %s361
        %s363 = sand.u32 %s168, 1
        %s364 = smul.addr %s363, 8
        %s365 = scalar_lea.vmem [#allocation13], %s364
        %s366 = smul.u32 2, %s33
        %s367 = smul.u32 32, %s34
        %s368 = smul.u32 2, %s34
        %s369 = smul.u32 2, %s33
        %s370 = smul.u32 2, %s33
        %p371 = scmp.eq.s32.totalorder %s34, 0
        // Predicated region
        $region53: #{tpu_custom_call.1} parent=35 // pred_check
          %p372 = pneg %p371
        $region54: #{tpu_custom_call.1} parent=35 // pred_check_branch
          %374 = sbr.rel (%p372) target = $region56
        $region55: #{tpu_custom_call.1} parent=35 // pred_region
          %v375 = vlaneseq
          %vm376 = vcmp.ge.s32.totalorder %v375, 0
          %vm377 = vcmp.lt.s32.totalorder %v375, 256
          %vm378 = vmand %vm376, %vm377
          %379 = vst.msk [vmem:[#allocation2] sm:$0x3] %vm378, -inf
          %380 = vst [vmem:[#allocation3] sm:$0xff] 0.0
          %381 = vst [vmem:[#allocation3 + $0x8] sm:$0xff] 0.0
          %382 = vst [vmem:[#allocation4] sm:$0xff] 0.0
          %383 = vst [vmem:[#allocation4 + $0x8] sm:$0xff] 0.0
          %384 = vst [vmem:[#allocation4 + $0x10] sm:$0xff] 0.0
          %385 = vst [vmem:[#allocation4 + $0x18] sm:$0xff] 0.0
        $region56: #{tpu_custom_call.1} parent=35 // pred_fallthru
          _
        %v386 = vld [vmem:[%s299] sm:$0xff]
        %v387 = vld [vmem:[%s299 + $0x8] sm:$0xff]
        %v388 = vld [vmem:[%s299 + $0x10] sm:$0xff]
        %v389 = vld [vmem:[%s299 + $0x18] sm:$0xff]
        %v390 = vld [vmem:[%s299 + $0x20] sm:$0xff]
        %v391 = vld [vmem:[%s299 + $0x28] sm:$0xff]
        %v392 = vld [vmem:[%s299 + $0x30] sm:$0xff]
        %v393 = vld [vmem:[%s299 + $0x38] sm:$0xff]
        %v394 = vld [vmem:[%s299 + $0x40] sm:$0xff]
        %v395 = vld [vmem:[%s299 + $0x48] sm:$0xff]
        %v396 = vld [vmem:[%s299 + $0x50] sm:$0xff]
        %v397 = vld [vmem:[%s299 + $0x58] sm:$0xff]
        %v398 = vld [vmem:[%s299 + $0x60] sm:$0xff]
        %v399 = vld [vmem:[%s299 + $0x68] sm:$0xff]
        %v400 = vld [vmem:[%s299 + $0x70] sm:$0xff]
        %v401 = vld [vmem:[%s299 + $0x78] sm:$0xff]
        %v402 = vld [vmem:[%s299 + $0x80] sm:$0xff]
        %v403 = vld [vmem:[%s299 + $0x88] sm:$0xff]
        %v404 = vld [vmem:[%s299 + $0x90] sm:$0xff]
        %v405 = vld [vmem:[%s299 + $0x98] sm:$0xff]
        %v406 = vld [vmem:[%s299 + $0xa0] sm:$0xff]
        %v407 = vld [vmem:[%s299 + $0xa8] sm:$0xff]
        %v408 = vld [vmem:[%s299 + $0xb0] sm:$0xff]
        %v409 = vld [vmem:[%s299 + $0xb8] sm:$0xff]
        %v410 = vld [vmem:[%s299 + $0xc0] sm:$0xff]
        %v411 = vld [vmem:[%s299 + $0xc8] sm:$0xff]
        %v412 = vld [vmem:[%s299 + $0xd0] sm:$0xff]
        %v413 = vld [vmem:[%s299 + $0xd8] sm:$0xff]
        %v414 = vld [vmem:[%s299 + $0xe0] sm:$0xff]
        %v415 = vld [vmem:[%s299 + $0xe8] sm:$0xff]
        %v416 = vld [vmem:[%s299 + $0xf0] sm:$0xff]
        %v417 = vld [vmem:[%s299 + $0xf8] sm:$0xff]
        %v418 = vld [vmem:[%s308] sm:$0xff]
        %v419 = vld [vmem:[%s308 + $0x8] sm:$0xff]
        %v420 = vld [vmem:[%s308 + $0x10] sm:$0xff]
        %v421 = vld [vmem:[%s308 + $0x18] sm:$0xff]
        %v422 = vld [vmem:[%s308 + $0x20] sm:$0xff]
        %v423 = vld [vmem:[%s308 + $0x28] sm:$0xff]
        %v424 = vld [vmem:[%s308 + $0x30] sm:$0xff]
        %v425 = vld [vmem:[%s308 + $0x38] sm:$0xff]
        %v426 = vld [vmem:[%s308 + $0x40] sm:$0xff]
        %v427 = vld [vmem:[%s308 + $0x48] sm:$0xff]
        %v428 = vld [vmem:[%s308 + $0x50] sm:$0xff]
        %v429 = vld [vmem:[%s308 + $0x58] sm:$0xff]
        %v430 = vld [vmem:[%s308 + $0x60] sm:$0xff]
        %v431 = vld [vmem:[%s308 + $0x68] sm:$0xff]
        %v432 = vld [vmem:[%s308 + $0x70] sm:$0xff]
        %v433 = vld [vmem:[%s308 + $0x78] sm:$0xff]
        %v434 = vld [vmem:[%s308 + $0x80] sm:$0xff]
        %v435 = vld [vmem:[%s308 + $0x88] sm:$0xff]
        %v436 = vld [vmem:[%s308 + $0x90] sm:$0xff]
        %v437 = vld [vmem:[%s308 + $0x98] sm:$0xff]
        %v438 = vld [vmem:[%s308 + $0xa0] sm:$0xff]
        %v439 = vld [vmem:[%s308 + $0xa8] sm:$0xff]
        %v440 = vld [vmem:[%s308 + $0xb0] sm:$0xff]
        %v441 = vld [vmem:[%s308 + $0xb8] sm:$0xff]
        %v442 = vld [vmem:[%s308 + $0xc0] sm:$0xff]
        %v443 = vld [vmem:[%s308 + $0xc8] sm:$0xff]
        %v444 = vld [vmem:[%s308 + $0xd0] sm:$0xff]
        %v445 = vld [vmem:[%s308 + $0xd8] sm:$0xff]
        %v446 = vld [vmem:[%s308 + $0xe0] sm:$0xff]
        %v447 = vld [vmem:[%s308 + $0xe8] sm:$0xff]
        %v448 = vld [vmem:[%s308 + $0xf0] sm:$0xff]
        %v449 = vld [vmem:[%s308 + $0xf8] sm:$0xff]
        %v450 = vld [vmem:[%s317] sm:$0xff]
        %v451 = vld [vmem:[%s317 + $0x8] sm:$0xff]
        %452 = vmatprep.subr.mxu0 %v387
        %453 = vmatpush1.msra.mxu0 %v386
        %454 = vmatprep.subr.mxu0 %v389
        %455 = vmatpush1.msra.mxu0 %v388
        %456 = vmatprep.subr.mxu0 %v391
        %457 = vmatpush1.msra.mxu0 %v390
        %458 = vmatprep.subr.mxu0 %v393
        %459 = vmatpush1.msra.mxu0 %v392
        %460 = vmatprep.subr.mxu0 %v395
        %461 = vmatpush1.msra.mxu0 %v394
        %462 = vmatprep.subr.mxu0 %v397
        %463 = vmatpush1.msra.mxu0 %v396
        %464 = vmatprep.subr.mxu0 %v399
        %465 = vmatpush1.msra.mxu0 %v398
        %466 = vmatprep.subr.mxu0 %v401
        %467 = vmatpush1.msra.mxu0 %v400
        %468 = vmatprep.subr.mxu0 %v403
        %469 = vmatpush1.msra.mxu0 %v402
        %470 = vmatprep.subr.mxu0 %v405
        %471 = vmatpush1.msra.mxu0 %v404
        %472 = vmatprep.subr.mxu0 %v407
        %473 = vmatpush1.msra.mxu0 %v406
        %474 = vmatprep.subr.mxu0 %v409
        %475 = vmatpush1.msra.mxu0 %v408
        %476 = vmatprep.subr.mxu0 %v411
        %477 = vmatpush1.msra.mxu0 %v410
        %478 = vmatprep.subr.mxu0 %v413
        %479 = vmatpush1.msra.mxu0 %v412
        %480 = vmatprep.subr.mxu0 %v415
        %481 = vmatpush1.msra.mxu0 %v414
        %482 = vmatprep.subr.mxu0 %v417
        %483 = vmatpush1.msra.mxu0 %v416
        %484 = vmatprep.subr.mxu0 0.0
        %485 = vmatpush1.msra.mxu0 0.0
        %486 = vmatprep.subr.mxu0 0.0
        %487 = vmatpush1.msra.mxu0 0.0
        %488 = vmatprep.subr.mxu0 0.0
        %489 = vmatpush1.msra.mxu0 0.0
        %490 = vmatprep.subr.mxu0 0.0
        %491 = vmatpush1.msra.mxu0 0.0
        %492 = vmatprep.subr.mxu0 0.0
        %493 = vmatpush1.msra.mxu0 0.0
        %494 = vmatprep.subr.mxu0 0.0
        %495 = vmatpush1.msra.mxu0 0.0
        %496 = vmatprep.subr.mxu0 0.0
        %497 = vmatpush1.msra.mxu0 0.0
        %498 = vmatprep.subr.mxu0 0.0
        %499 = vmatpush1.msra.mxu0 0.0
        %500 = vmatprep.subr.mxu0 0.0
        %501 = vmatpush1.msra.mxu0 0.0
        %502 = vmatprep.subr.mxu0 0.0
        %503 = vmatpush1.msra.mxu0 0.0
        %504 = vmatprep.subr.mxu0 0.0
        %505 = vmatpush1.msra.mxu0 0.0
        %506 = vmatprep.subr.mxu0 0.0
        %507 = vmatpush1.msra.mxu0 0.0
        %508 = vmatprep.subr.mxu0 0.0
        %509 = vmatpush1.msra.mxu0 0.0
        %510 = vmatprep.subr.mxu0 0.0
        %511 = vmatpush1.msra.mxu0 0.0
        %512 = vmatprep.subr.mxu0 0.0
        %513 = vmatpush1.msra.mxu0 0.0
        %514 = vmatprep.subr.mxu0 0.0
        %515 = vmatpush1.msra.mxu0 0.0
        %516 = vmatprep.mubr.f32.mxu0 0.0
        %517 = vmatmul.mubr.f32.gmra.mrb[0].mxu0 %v418
        %v518 = vpop.f32.mrb[0].mxu0
        %v519 = vadd.f32 0.0, %v518
        %v520 = vpop.f32.mrb[0].mxu0
        %v521 = vadd.f32 0.0, %v520
        %522 = vmatprep.mubr.f32.mxu0 0.0
        %523 = vmatmul.mubr.f32.gmra.mrb[0].mxu0 %v419
        %v524 = vpop.f32.mrb[0].mxu0
        %v525 = vadd.f32 0.0, %v524
        %v526 = vpop.f32.mrb[0].mxu0
        %v527 = vadd.f32 0.0, %v526
        %528 = vmatprep.mubr.f32.mxu0 0.0
        %529 = vmatmul.mubr.f32.gmra.mrb[0].mxu0 %v420
        %v530 = vpop.f32.mrb[0].mxu0
        %v531 = vadd.f32 0.0, %v530
        %v532 = vpop.f32.mrb[0].mxu0
        %v533 = vadd.f32 0.0, %v532
        %534 = vmatprep.mubr.f32.mxu0 0.0
        %535 = vmatmul.mubr.f32.gmra.mrb[0].mxu0 %v421
        %v536 = vpop.f32.mrb[0].mxu0
        %v537 = vadd.f32 0.0, %v536
        %v538 = vpop.f32.mrb[0].mxu0
        %v539 = vadd.f32 0.0, %v538
        %540 = vmatprep.mubr.f32.mxu0 0.0
        %541 = vmatmul.mubr.f32.gmra.mrb[0].mxu0 %v422
        %v542 = vpop.f32.mrb[0].mxu0
        %v543 = vadd.f32 0.0, %v542
        %v544 = vpop.f32.mrb[0].mxu0
        %v545 = vadd.f32 0.0, %v544
        %546 = vmatprep.mubr.f32.mxu0 0.0
        %547 = vmatmul.mubr.f32.gmra.mrb[0].mxu0 %v423
        %v548 = vpop.f32.mrb[0].mxu0
        %v549 = vadd.f32 0.0, %v548
        %v550 = vpop.f32.mrb[0].mxu0
        %v551 = vadd.f32 0.0, %v550
        %552 = vmatprep.mubr.f32.mxu0 0.0
        %553 = vmatmul.mubr.f32.gmra.mrb[0].mxu0 %v424
        %v554 = vpop.f32.mrb[0].mxu0
        %v555 = vadd.f32 0.0, %v554
        %v556 = vpop.f32.mrb[0].mxu0
        %v557 = vadd.f32 0.0, %v556
        %558 = vmatprep.mubr.f32.mxu0 0.0
        %559 = vmatmul.mubr.f32.gmra.mrb[0].mxu0 %v425
        %v560 = vpop.f32.mrb[0].mxu0
        %v561 = vadd.f32 0.0, %v560
        %v562 = vpop.f32.mrb[0].mxu0
        %v563 = vadd.f32 0.0, %v562
        %564 = vmatprep.mubr.f32.mxu0 0.0
        %565 = vmatmul.mubr.f32.gmra.mrb[0].mxu0 %v426
        %v566 = vpop.f32.mrb[0].mxu0
        %v567 = vadd.f32 0.0, %v566
        %v568 = vpop.f32.mrb[0].mxu0
        %v569 = vadd.f32 0.0, %v568
        %570 = vmatprep.mubr.f32.mxu0 0.0
        %571 = vmatmul.mubr.f32.gmra.mrb[0].mxu0 %v427
        %v572 = vpop.f32.mrb[0].mxu0
        %v573 = vadd.f32 0.0, %v572
        %v574 = vpop.f32.mrb[0].mxu0
        %v575 = vadd.f32 0.0, %v574
        %576 = vmatprep.mubr.f32.mxu0 0.0
        %577 = vmatmul.mubr.f32.gmra.mrb[0].mxu0 %v428
        %v578 = vpop.f32.mrb[0].mxu0
        %v579 = vadd.f32 0.0, %v578
        %v580 = vpop.f32.mrb[0].mxu0
        %v581 = vadd.f32 0.0, %v580
        %582 = vmatprep.mubr.f32.mxu0 0.0
        %583 = vmatmul.mubr.f32.gmra.mrb[0].mxu0 %v429
        %v584 = vpop.f32.mrb[0].mxu0
        %v585 = vadd.f32 0.0, %v584
        %v586 = vpop.f32.mrb[0].mxu0
        %v587 = vadd.f32 0.0, %v586
        %588 = vmatprep.mubr.f32.mxu0 0.0
        %589 = vmatmul.mubr.f32.gmra.mrb[0].mxu0 %v430
        %v590 = vpop.f32.mrb[0].mxu0
        %v591 = vadd.f32 0.0, %v590
        %v592 = vpop.f32.mrb[0].mxu0
        %v593 = vadd.f32 0.0, %v592
        %594 = vmatprep.mubr.f32.mxu0 0.0
        %595 = vmatmul.mubr.f32.gmra.mrb[0].mxu0 %v431
        %v596 = vpop.f32.mrb[0].mxu0
        %v597 = vadd.f32 0.0, %v596
        %v598 = vpop.f32.mrb[0].mxu0
        %v599 = vadd.f32 0.0, %v598
        %600 = vmatprep.mubr.f32.mxu0 0.0
        %601 = vmatmul.mubr.f32.gmra.mrb[0].mxu0 %v432
        %v602 = vpop.f32.mrb[0].mxu0
        %v603 = vadd.f32 0.0, %v602
        %v604 = vpop.f32.mrb[0].mxu0
        %v605 = vadd.f32 0.0, %v604
        %606 = vmatprep.mubr.f32.mxu0 0.0
        %607 = vmatmul.mubr.f32.gmra.mrb[0].mxu0 %v433
        %v608 = vpop.f32.mrb[0].mxu0
        %v609 = vadd.f32 0.0, %v608
        %v610 = vpop.f32.mrb[0].mxu0
        %v611 = vadd.f32 0.0, %v610
        %612 = vmatprep.mubr.f32.mxu0 0.0
        %613 = vmatmul.mubr.f32.gmra.mrb[0].mxu0 %v434
        %v614 = vpop.f32.mrb[0].mxu0
        %v615 = vadd.f32 0.0, %v614
        %v616 = vpop.f32.mrb[0].mxu0
        %v617 = vadd.f32 0.0, %v616
        %618 = vmatprep.mubr.f32.mxu0 0.0
        %619 = vmatmul.mubr.f32.gmra.mrb[0].mxu0 %v435
        %v620 = vpop.f32.mrb[0].mxu0
        %v621 = vadd.f32 0.0, %v620
        %v622 = vpop.f32.mrb[0].mxu0
        %v623 = vadd.f32 0.0, %v622
        %624 = vmatprep.mubr.f32.mxu0 0.0
        %625 = vmatmul.mubr.f32.gmra.mrb[0].mxu0 %v436
        %v626 = vpop.f32.mrb[0].mxu0
        %v627 = vadd.f32 0.0, %v626
        %v628 = vpop.f32.mrb[0].mxu0
        %v629 = vadd.f32 0.0, %v628
        %630 = vmatprep.mubr.f32.mxu0 0.0
        %631 = vmatmul.mubr.f32.gmra.mrb[0].mxu0 %v437
        %v632 = vpop.f32.mrb[0].mxu0
        %v633 = vadd.f32 0.0, %v632
        %v634 = vpop.f32.mrb[0].mxu0
        %v635 = vadd.f32 0.0, %v634
        %636 = vmatprep.mubr.f32.mxu0 0.0
        %637 = vmatmul.mubr.f32.gmra.mrb[0].mxu0 %v438
        %v638 = vpop.f32.mrb[0].mxu0
        %v639 = vadd.f32 0.0, %v638
        %v640 = vpop.f32.mrb[0].mxu0
        %v641 = vadd.f32 0.0, %v640
        %642 = vmatprep.mubr.f32.mxu0 0.0
        %643 = vmatmul.mubr.f32.gmra.mrb[0].mxu0 %v439
        %v644 = vpop.f32.mrb[0].mxu0
        %v645 = vadd.f32 0.0, %v644
        %v646 = vpop.f32.mrb[0].mxu0
        %v647 = vadd.f32 0.0, %v646
        %648 = vmatprep.mubr.f32.mxu0 0.0
        %649 = vmatmul.mubr.f32.gmra.mrb[0].mxu0 %v440
        %v650 = vpop.f32.mrb[0].mxu0
        %v651 = vadd.f32 0.0, %v650
        %v652 = vpop.f32.mrb[0].mxu0
        %v653 = vadd.f32 0.0, %v652
        %654 = vmatprep.mubr.f32.mxu0 0.0
        %655 = vmatmul.mubr.f32.gmra.mrb[0].mxu0 %v441
        %v656 = vpop.f32.mrb[0].mxu0
        %v657 = vadd.f32 0.0, %v656
        %v658 = vpop.f32.mrb[0].mxu0
        %v659 = vadd.f32 0.0, %v658
        %660 = vmatprep.mubr.f32.mxu0 0.0
        %661 = vmatmul.mubr.f32.gmra.mrb[0].mxu0 %v442
        %v662 = vpop.f32.mrb[0].mxu0
        %v663 = vadd.f32 0.0, %v662
        %v664 = vpop.f32.mrb[0].mxu0
        %v665 = vadd.f32 0.0, %v664
        %666 = vmatprep.mubr.f32.mxu0 0.0
        %667 = vmatmul.mubr.f32.gmra.mrb[0].mxu0 %v443
        %v668 = vpop.f32.mrb[0].mxu0
        %v669 = vadd.f32 0.0, %v668
        %v670 = vpop.f32.mrb[0].mxu0
        %v671 = vadd.f32 0.0, %v670
        %672 = vmatprep.mubr.f32.mxu0 0.0
        %673 = vmatmul.mubr.f32.gmra.mrb[0].mxu0 %v444
        %v674 = vpop.f32.mrb[0].mxu0
        %v675 = vadd.f32 0.0, %v674
        %v676 = vpop.f32.mrb[0].mxu0
        %v677 = vadd.f32 0.0, %v676
        %678 = vmatprep.mubr.f32.mxu0 0.0
        %679 = vmatmul.mubr.f32.gmra.mrb[0].mxu0 %v445
        %v680 = vpop.f32.mrb[0].mxu0
        %v681 = vadd.f32 0.0, %v680
        %v682 = vpop.f32.mrb[0].mxu0
        %v683 = vadd.f32 0.0, %v682
        %684 = vmatprep.mubr.f32.mxu0 0.0
        %685 = vmatmul.mubr.f32.gmra.mrb[0].mxu0 %v446
        %v686 = vpop.f32.mrb[0].mxu0
        %v687 = vadd.f32 0.0, %v686
        %v688 = vpop.f32.mrb[0].mxu0
        %v689 = vadd.f32 0.0, %v688
        %690 = vmatprep.mubr.f32.mxu0 0.0
        %691 = vmatmul.mubr.f32.gmra.mrb[0].mxu0 %v447
        %v692 = vpop.f32.mrb[0].mxu0
        %v693 = vadd.f32 0.0, %v692
        %v694 = vpop.f32.mrb[0].mxu0
        %v695 = vadd.f32 0.0, %v694
        %696 = vmatprep.mubr.f32.mxu0 0.0
        %697 = vmatmul.mubr.f32.gmra.mrb[0].mxu0 %v448
        %v698 = vpop.f32.mrb[0].mxu0
        %v699 = vadd.f32 0.0, %v698
        %v700 = vpop.f32.mrb[0].mxu0
        %v701 = vadd.f32 0.0, %v700
        %702 = vmatprep.mubr.f32.mxu0 0.0
        %703 = vmatmul.mubr.f32.gmra.mrb[0].mxu0 %v449
        %v704 = vpop.f32.mrb[0].mxu0
        %v705 = vadd.f32 0.0, %v704
        %v706 = vpop.f32.mrb[0].mxu0
        %v707 = vadd.f32 0.0, %v706
        %708 = vdwg.mxu0
        %v709 = vld [vmem:[#allocation2] sm:$0x3]
        %v710 = vmax.f32 %v519, %v531
        %v711 = vmax.f32 %v525, %v537
        %v712 = vmax.f32 %v710, %v543
        %v713 = vmax.f32 %v711, %v549
        %v714 = vmax.f32 %v712, %v555
        %v715 = vmax.f32 %v713, %v561
        %v716 = vmax.f32 %v714, %v567
        %v717 = vmax.f32 %v715, %v573
        %v718 = vmax.f32 %v716, %v579
        %v719 = vmax.f32 %v717, %v585
        %v720 = vmax.f32 %v718, %v591
        %v721 = vmax.f32 %v719, %v597
        %v722 = vmax.f32 %v720, %v603
        %v723 = vmax.f32 %v721, %v609
        %v724 = vmax.f32 %v722, %v615
        %v725 = vmax.f32 %v723, %v621
        %v726 = vmax.f32 %v724, %v627
        %v727 = vmax.f32 %v725, %v633
        %v728 = vmax.f32 %v726, %v639
        %v729 = vmax.f32 %v727, %v645
        %v730 = vmax.f32 %v728, %v651
        %v731 = vmax.f32 %v729, %v657
        %v732 = vmax.f32 %v730, %v663
        %v733 = vmax.f32 %v731, %v669
        %v734 = vmax.f32 %v732, %v675
        %v735 = vmax.f32 %v733, %v681
        %v736 = vmax.f32 %v734, %v687
        %v737 = vmax.f32 %v735, %v693
        %v738 = vmax.f32 %v736, %v699
        %v739 = vmax.f32 %v737, %v705
        %v740 = vmax.f32 %v738, %v739
        %v741 = vrot.slane %v740, 4
        %v742 = vmax.f32 %v740, %v741
        %v743 = vrot.slane %v742, 2
        %v744 = vmax.f32 %v742, %v743
        %v745 = vrot.slane %v744, 1
        %v746 = vmax.f32 %v744, %v745
        %v747 = vmax.f32 %v521, %v533
        %v748 = vmax.f32 %v527, %v539
        %v749 = vmax.f32 %v747, %v545
        %v750 = vmax.f32 %v748, %v551
        %v751 = vmax.f32 %v749, %v557
        %v752 = vmax.f32 %v750, %v563
        %v753 = vmax.f32 %v751, %v569
        %v754 = vmax.f32 %v752, %v575
        %v755 = vmax.f32 %v753, %v581
        %v756 = vmax.f32 %v754, %v587
        %v757 = vmax.f32 %v755, %v593
        %v758 = vmax.f32 %v756, %v599
        %v759 = vmax.f32 %v757, %v605
        %v760 = vmax.f32 %v758, %v611
        %v761 = vmax.f32 %v759, %v617
        %v762 = vmax.f32 %v760, %v623
        %v763 = vmax.f32 %v761, %v629
        %v764 = vmax.f32 %v762, %v635
        %v765 = vmax.f32 %v763, %v641
        %v766 = vmax.f32 %v764, %v647
        %v767 = vmax.f32 %v765, %v653
        %v768 = vmax.f32 %v766, %v659
        %v769 = vmax.f32 %v767, %v665
        %v770 = vmax.f32 %v768, %v671
        %v771 = vmax.f32 %v769, %v677
        %v772 = vmax.f32 %v770, %v683
        %v773 = vmax.f32 %v771, %v689
        %v774 = vmax.f32 %v772, %v695
        %v775 = vmax.f32 %v773, %v701
        %v776 = vmax.f32 %v774, %v707
        %v777 = vmax.f32 %v775, %v776
        %v778 = vrot.slane %v777, 4
        %v779 = vmax.f32 %v777, %v778
        %v780 = vrot.slane %v779, 2
        %v781 = vmax.f32 %v779, %v780
        %v782 = vrot.slane %v781, 1
        %v783 = vmax.f32 %v781, %v782
        %v786 = vcombine.low %v746, %v783
        %v788 = vunpack.c.l.s4 1966171168
        %v789 = vunpack.c.0.s8 %v788
        %v790 = vlaneseq
        %v791 = vshrl.u32 %v790, 7
        %v792 = vsub.s32 %v789, %v791
        %v793 = vrot.slane %v786, %v792
        %v795 = vunpack.c.l.s4 1966171168
        %v796 = vunpack.c.0.s8 %v795
        %v797 = vlaneseq
        %v798 = vshrl.u32 %v797, 7
        %v799 = vsub.s32 %v796, %v798
        %v800 = vrot.slane %v793, %v799
        %v802 = vmax.f32 %v709, %v800
        %v803 = vsub.f32 %v709, %v802
        %v804 = vmul.f32 %v803, 1.442695
        %v805 = vpow.pop %v804
        %v807 = vlaneseq
        %v808 = vshrl.u32 %v807, 7
        %v809 = vsub.s32 0, %v808
        %v810 = vrot.slane %v802, %v809
        %v811 = vlaneseq
        %v812 = vshrl.u32 %v811, 7
        %v813 = vsub.s32 1, %v812
        %v814 = vrot.slane %v802, %v813
        %v817 = vsub.f32 %v519, %v810
        %v818 = vsub.f32 %v521, %v814
        %v819 = vsub.f32 %v525, %v810
        %v820 = vsub.f32 %v527, %v814
        %v821 = vsub.f32 %v531, %v810
        %v822 = vsub.f32 %v533, %v814
        %v823 = vsub.f32 %v537, %v810
        %v824 = vsub.f32 %v539, %v814
        %v825 = vsub.f32 %v543, %v810
        %v826 = vsub.f32 %v545, %v814
        %v827 = vsub.f32 %v549, %v810
        %v828 = vsub.f32 %v551, %v814
        %v829 = vsub.f32 %v555, %v810
        %v830 = vsub.f32 %v557, %v814
        %v831 = vsub.f32 %v561, %v810
        %v832 = vsub.f32 %v563, %v814
        %v833 = vsub.f32 %v567, %v810
        %v834 = vsub.f32 %v569, %v814
        %v835 = vsub.f32 %v573, %v810
        %v836 = vsub.f32 %v575, %v814
        %v837 = vsub.f32 %v579, %v810
        %v838 = vsub.f32 %v581, %v814
        %v839 = vsub.f32 %v585, %v810
        %v840 = vsub.f32 %v587, %v814
        %v841 = vsub.f32 %v591, %v810
        %v842 = vsub.f32 %v593, %v814
        %v843 = vsub.f32 %v597, %v810
        %v844 = vsub.f32 %v599, %v814
        %v845 = vsub.f32 %v603, %v810
        %v846 = vsub.f32 %v605, %v814
        %v847 = vsub.f32 %v609, %v810
        %v848 = vsub.f32 %v611, %v814
        %v849 = vsub.f32 %v615, %v810
        %v850 = vsub.f32 %v617, %v814
        %v851 = vsub.f32 %v621, %v810
        %v852 = vsub.f32 %v623, %v814
        %v853 = vsub.f32 %v627, %v810
        %v854 = vsub.f32 %v629, %v814
        %v855 = vsub.f32 %v633, %v810
        %v856 = vsub.f32 %v635, %v814
        %v857 = vsub.f32 %v639, %v810
        %v858 = vsub.f32 %v641, %v814
        %v859 = vsub.f32 %v645, %v810
        %v860 = vsub.f32 %v647, %v814
        %v861 = vsub.f32 %v651, %v810
        %v862 = vsub.f32 %v653, %v814
        %v863 = vsub.f32 %v657, %v810
        %v864 = vsub.f32 %v659, %v814
        %v865 = vsub.f32 %v663, %v810
        %v866 = vsub.f32 %v665, %v814
        %v867 = vsub.f32 %v669, %v810
        %v868 = vsub.f32 %v671, %v814
        %v869 = vsub.f32 %v675, %v810
        %v870 = vsub.f32 %v677, %v814
        %v871 = vsub.f32 %v681, %v810
        %v872 = vsub.f32 %v683, %v814
        %v873 = vsub.f32 %v687, %v810
        %v874 = vsub.f32 %v689, %v814
        %v875 = vsub.f32 %v693, %v810
        %v876 = vsub.f32 %v695, %v814
        %v877 = vsub.f32 %v699, %v810
        %v878 = vsub.f32 %v701, %v814
        %v879 = vsub.f32 %v705, %v810
        %v880 = vsub.f32 %v707, %v814
        %v881 = vmul.f32 %v817, 1.442695
        %v882 = vpow.pop %v881
        %v883 = vmul.f32 %v818, 1.442695
        %v884 = vpow.pop %v883
        %v885 = vmul.f32 %v819, 1.442695
        %v886 = vpow.pop %v885
        %v887 = vmul.f32 %v820, 1.442695
        %v888 = vpow.pop %v887
        %v889 = vmul.f32 %v821, 1.442695
        %v890 = vpow.pop %v889
        %v891 = vmul.f32 %v822, 1.442695
        %v892 = vpow.pop %v891
        %v893 = vmul.f32 %v823, 1.442695
        %v894 = vpow.pop %v893
        %v895 = vmul.f32 %v824, 1.442695
        %v896 = vpow.pop %v895
        %v897 = vmul.f32 %v825, 1.442695
        %v898 = vpow.pop %v897
        %v899 = vmul.f32 %v826, 1.442695
        %v900 = vpow.pop %v899
        %v901 = vmul.f32 %v827, 1.442695
        %v902 = vpow.pop %v901
        %v903 = vmul.f32 %v828, 1.442695
        %v904 = vpow.pop %v903
        %v905 = vmul.f32 %v829, 1.442695
        %v906 = vpow.pop %v905
        %v907 = vmul.f32 %v830, 1.442695
        %v908 = vpow.pop %v907
        %v909 = vmul.f32 %v831, 1.442695
        %v910 = vpow.pop %v909
        %v911 = vmul.f32 %v832, 1.442695
        %v912 = vpow.pop %v911
        %v913 = vmul.f32 %v833, 1.442695
        %v914 = vpow.pop %v913
        %v915 = vmul.f32 %v834, 1.442695
        %v916 = vpow.pop %v915
        %v917 = vmul.f32 %v835, 1.442695
        %v918 = vpow.pop %v917
        %v919 = vmul.f32 %v836, 1.442695
        %v920 = vpow.pop %v919
        %v921 = vmul.f32 %v837, 1.442695
        %v922 = vpow.pop %v921
        %v923 = vmul.f32 %v838, 1.442695
        %v924 = vpow.pop %v923
        %v925 = vmul.f32 %v839, 1.442695
        %v926 = vpow.pop %v925
        %v927 = vmul.f32 %v840, 1.442695
        %v928 = vpow.pop %v927
        %v929 = vmul.f32 %v841, 1.442695
        %v930 = vpow.pop %v929
        %v931 = vmul.f32 %v842, 1.442695
        %v932 = vpow.pop %v931
        %v933 = vmul.f32 %v843, 1.442695
        %v934 = vpow.pop %v933
        %v935 = vmul.f32 %v844, 1.442695
        %v936 = vpow.pop %v935
        %v937 = vmul.f32 %v845, 1.442695
        %v938 = vpow.pop %v937
        %v939 = vmul.f32 %v846, 1.442695
        %v940 = vpow.pop %v939
        %v941 = vmul.f32 %v847, 1.442695
        %v942 = vpow.pop %v941
        %v943 = vmul.f32 %v848, 1.442695
        %v944 = vpow.pop %v943
        %v945 = vmul.f32 %v849, 1.442695
        %v946 = vpow.pop %v945
        %v947 = vmul.f32 %v850, 1.442695
        %v948 = vpow.pop %v947
        %v949 = vmul.f32 %v851, 1.442695
        %v950 = vpow.pop %v949
        %v951 = vmul.f32 %v852, 1.442695
        %v952 = vpow.pop %v951
        %v953 = vmul.f32 %v853, 1.442695
        %v954 = vpow.pop %v953
        %v955 = vmul.f32 %v854, 1.442695
        %v956 = vpow.pop %v955
        %v957 = vmul.f32 %v855, 1.442695
        %v958 = vpow.pop %v957
        %v959 = vmul.f32 %v856, 1.442695
        %v960 = vpow.pop %v959
        %v961 = vmul.f32 %v857, 1.442695
        %v962 = vpow.pop %v961
        %v963 = vmul.f32 %v858, 1.442695
        %v964 = vpow.pop %v963
        %v965 = vmul.f32 %v859, 1.442695
        %v966 = vpow.pop %v965
        %v967 = vmul.f32 %v860, 1.442695
        %v968 = vpow.pop %v967
        %v969 = vmul.f32 %v861, 1.442695
        %v970 = vpow.pop %v969
        %v971 = vmul.f32 %v862, 1.442695
        %v972 = vpow.pop %v971
        %v973 = vmul.f32 %v863, 1.442695
        %v974 = vpow.pop %v973
        %v975 = vmul.f32 %v864, 1.442695
        %v976 = vpow.pop %v975
        %v977 = vmul.f32 %v865, 1.442695
        %v978 = vpow.pop %v977
        %v979 = vmul.f32 %v866, 1.442695
        %v980 = vpow.pop %v979
        %v981 = vmul.f32 %v867, 1.442695
        %v982 = vpow.pop %v981
        %v983 = vmul.f32 %v868, 1.442695
        %v984 = vpow.pop %v983
        %v985 = vmul.f32 %v869, 1.442695
        %v986 = vpow.pop %v985
        %v987 = vmul.f32 %v870, 1.442695
        %v988 = vpow.pop %v987
        %v989 = vmul.f32 %v871, 1.442695
        %v990 = vpow.pop %v989
        %v991 = vmul.f32 %v872, 1.442695
        %v992 = vpow.pop %v991
        %v993 = vmul.f32 %v873, 1.442695
        %v994 = vpow.pop %v993
        %v995 = vmul.f32 %v874, 1.442695
        %v996 = vpow.pop %v995
        %v997 = vmul.f32 %v875, 1.442695
        %v998 = vpow.pop %v997
        %v999 = vmul.f32 %v876, 1.442695
        %v1000 = vpow.pop %v999
        %v1001 = vmul.f32 %v877, 1.442695
        %v1002 = vpow.pop %v1001
        %v1003 = vmul.f32 %v878, 1.442695
        %v1004 = vpow.pop %v1003
        %v1005 = vmul.f32 %v879, 1.442695
        %v1006 = vpow.pop %v1005
        %v1007 = vmul.f32 %v880, 1.442695
        %v1008 = vpow.pop %v1007
        %v1009 = vmul.f32 %v450, %v450
        %v1010 = vmul.f32 %v451, %v451
        %1011 = vmatprep.subr.mxu0 %v884
        %1012 = vmatpush1.msra.mxu0 %v882
        %1013 = vmatprep.subr.mxu0 %v888
        %1014 = vmatpush1.msra.mxu0 %v886
        %1015 = vmatprep.subr.mxu0 %v892
        %1016 = vmatpush1.msra.mxu0 %v890
        %1017 = vmatprep.subr.mxu0 %v896
        %1018 = vmatpush1.msra.mxu0 %v894
        %1019 = vmatprep.subr.mxu0 %v900
        %1020 = vmatpush1.msra.mxu0 %v898
        %1021 = vmatprep.subr.mxu0 %v904
        %1022 = vmatpush1.msra.mxu0 %v902
        %1023 = vmatprep.subr.mxu0 %v908
        %1024 = vmatpush1.msra.mxu0 %v906
        %1025 = vmatprep.subr.mxu0 %v912
        %1026 = vmatpush1.msra.mxu0 %v910
        %1027 = vmatprep.subr.mxu0 %v916
        %1028 = vmatpush1.msra.mxu0 %v914
        %1029 = vmatprep.subr.mxu0 %v920
        %1030 = vmatpush1.msra.mxu0 %v918
        %1031 = vmatprep.subr.mxu0 %v924
        %1032 = vmatpush1.msra.mxu0 %v922
        %1033 = vmatprep.subr.mxu0 %v928
        %1034 = vmatpush1.msra.mxu0 %v926
        %1035 = vmatprep.subr.mxu0 %v932
        %1036 = vmatpush1.msra.mxu0 %v930
        %1037 = vmatprep.subr.mxu0 %v936
        %1038 = vmatpush1.msra.mxu0 %v934
        %1039 = vmatprep.subr.mxu0 %v940
        %1040 = vmatpush1.msra.mxu0 %v938
        %1041 = vmatprep.subr.mxu0 %v944
        %1042 = vmatpush1.msra.mxu0 %v942
        %1043 = vmatprep.subr.mxu0 %v948
        %1044 = vmatpush1.msra.mxu0 %v946
        %1045 = vmatprep.subr.mxu0 %v952
        %1046 = vmatpush1.msra.mxu0 %v950
        %1047 = vmatprep.subr.mxu0 %v956
        %1048 = vmatpush1.msra.mxu0 %v954
        %1049 = vmatprep.subr.mxu0 %v960
        %1050 = vmatpush1.msra.mxu0 %v958
        %1051 = vmatprep.subr.mxu0 %v964
        %1052 = vmatpush1.msra.mxu0 %v962
        %1053 = vmatprep.subr.mxu0 %v968
        %1054 = vmatpush1.msra.mxu0 %v966
        %1055 = vmatprep.subr.mxu0 %v972
        %1056 = vmatpush1.msra.mxu0 %v970
        %1057 = vmatprep.subr.mxu0 %v976
        %1058 = vmatpush1.msra.mxu0 %v974
        %1059 = vmatprep.subr.mxu0 %v980
        %1060 = vmatpush1.msra.mxu0 %v978
        %1061 = vmatprep.subr.mxu0 %v984
        %1062 = vmatpush1.msra.mxu0 %v982
        %1063 = vmatprep.subr.mxu0 %v988
        %1064 = vmatpush1.msra.mxu0 %v986
        %1065 = vmatprep.subr.mxu0 %v992
        %1066 = vmatpush1.msra.mxu0 %v990
        %1067 = vmatprep.subr.mxu0 %v996
        %1068 = vmatpush1.msra.mxu0 %v994
        %1069 = vmatprep.subr.mxu0 %v1000
        %1070 = vmatpush1.msra.mxu0 %v998
        %1071 = vmatprep.subr.mxu0 %v1004
        %1072 = vmatpush1.msra.mxu0 %v1002
        %1073 = vmatprep.subr.mxu0 %v1008
        %1074 = vmatpush1.msra.mxu0 %v1006
        %1075 = vmatprep.mubr.f32.mxu0 %v451
        %1076 = vmatmul.mubr.f32.gmra.mrb[0].mxu0 %v450
        %v1077 = vpop.f32.mrb[0].mxu0
        %v1078 = vadd.f32 0.0, %v1077
        %v1079 = vpop.f32.mrb[0].mxu0
        %v1080 = vadd.f32 0.0, %v1079
        %1081 = vdwg.mxu0
        %1082 = vmatprep.subr.mxu0 %v884
        %1083 = vmatpush1.msra.mxu0 %v882
        %1084 = vmatprep.subr.mxu0 %v888
        %1085 = vmatpush1.msra.mxu0 %v886
        %1086 = vmatprep.subr.mxu0 %v892
        %1087 = vmatpush1.msra.mxu0 %v890
        %1088 = vmatprep.subr.mxu0 %v896
        %1089 = vmatpush1.msra.mxu0 %v894
        %1090 = vmatprep.subr.mxu0 %v900
        %1091 = vmatpush1.msra.mxu0 %v898
        %1092 = vmatprep.subr.mxu0 %v904
        %1093 = vmatpush1.msra.mxu0 %v902
        %1094 = vmatprep.subr.mxu0 %v908
        %1095 = vmatpush1.msra.mxu0 %v906
        %1096 = vmatprep.subr.mxu0 %v912
        %1097 = vmatpush1.msra.mxu0 %v910
        %1098 = vmatprep.subr.mxu0 %v916
        %1099 = vmatpush1.msra.mxu0 %v914
        %1100 = vmatprep.subr.mxu0 %v920
        %1101 = vmatpush1.msra.mxu0 %v918
        %1102 = vmatprep.subr.mxu0 %v924
        %1103 = vmatpush1.msra.mxu0 %v922
        %1104 = vmatprep.subr.mxu0 %v928
        %1105 = vmatpush1.msra.mxu0 %v926
        %1106 = vmatprep.subr.mxu0 %v932
        %1107 = vmatpush1.msra.mxu0 %v930
        %1108 = vmatprep.subr.mxu0 %v936
        %1109 = vmatpush1.msra.mxu0 %v934
        %1110 = vmatprep.subr.mxu0 %v940
        %1111 = vmatpush1.msra.mxu0 %v938
        %1112 = vmatprep.subr.mxu0 %v944
        %1113 = vmatpush1.msra.mxu0 %v942
        %1114 = vmatprep.subr.mxu0 %v948
        %1115 = vmatpush1.msra.mxu0 %v946
        %1116 = vmatprep.subr.mxu0 %v952
        %1117 = vmatpush1.msra.mxu0 %v950
        %1118 = vmatprep.subr.mxu0 %v956
        %1119 = vmatpush1.msra.mxu0 %v954
        %1120 = vmatprep.subr.mxu0 %v960
        %1121 = vmatpush1.msra.mxu0 %v958
        %1122 = vmatprep.subr.mxu0 %v964
        %1123 = vmatpush1.msra.mxu0 %v962
        %1124 = vmatprep.subr.mxu0 %v968
        %1125 = vmatpush1.msra.mxu0 %v966
        %1126 = vmatprep.subr.mxu0 %v972
        %1127 = vmatpush1.msra.mxu0 %v970
        %1128 = vmatprep.subr.mxu0 %v976
        %1129 = vmatpush1.msra.mxu0 %v974
        %1130 = vmatprep.subr.mxu0 %v980
        %1131 = vmatpush1.msra.mxu0 %v978
        %1132 = vmatprep.subr.mxu0 %v984
        %1133 = vmatpush1.msra.mxu0 %v982
        %1134 = vmatprep.subr.mxu0 %v988
        %1135 = vmatpush1.msra.mxu0 %v986
        %1136 = vmatprep.subr.mxu0 %v992
        %1137 = vmatpush1.msra.mxu0 %v990
        %1138 = vmatprep.subr.mxu0 %v996
        %1139 = vmatpush1.msra.mxu0 %v994
        %1140 = vmatprep.subr.mxu0 %v1000
        %1141 = vmatpush1.msra.mxu0 %v998
        %1142 = vmatprep.subr.mxu0 %v1004
        %1143 = vmatpush1.msra.mxu0 %v1002
        %1144 = vmatprep.subr.mxu0 %v1008
        %1145 = vmatpush1.msra.mxu0 %v1006
        %1146 = vmatprep.mubr.f32.mxu0 %v1010
        %1147 = vmatmul.mubr.f32.gmra.mrb[0].mxu0 %v1009
        %v1148 = vpop.f32.mrb[0].mxu0
        %v1149 = vadd.f32 0.0, %v1148
        %v1150 = vpop.f32.mrb[0].mxu0
        %v1151 = vadd.f32 0.0, %v1150
        %1152 = vmatprep.mubr.f32.mxu0 1.0
        %1153 = vmatmul.mubr.f32.gmra.mrb[0].mxu0 1.0
        %v1154 = vpop.f32.mrb[0].mxu0
        %v1155 = vadd.f32 0.0, %v1154
        %v1156 = vpop.f32.mrb[0].mxu0
        %v1157 = vadd.f32 0.0, %v1156
        %1158 = vdwg.mxu0
        %v1159 = vld [vmem:[#allocation3] sm:$0xff]
        %v1160 = vld [vmem:[#allocation3 + $0x8] sm:$0xff]
        %v1162 = vlaneseq
        %v1163 = vshrl.u32 %v1162, 7
        %v1164 = vsub.s32 0, %v1163
        %v1165 = vrot.slane %v805, %v1164
        %v1166 = vlaneseq
        %v1167 = vshrl.u32 %v1166, 7
        %v1168 = vsub.s32 1, %v1167
        %v1169 = vrot.slane %v805, %v1168
        %v1172 = vmul.f32 %v1165, %v1159
        %v1173 = vmul.f32 %v1169, %v1160
        %v1174 = vadd.f32 %v1172, %v1078
        %v1175 = vadd.f32 %v1173, %v1080
        %1176 = vst [vmem:[#allocation3] sm:$0xff] %v1174
        %1177 = vst [vmem:[#allocation3 + $0x8] sm:$0xff] %v1175
        %v1178 = vld [vmem:[#allocation4] sm:$0xff]
        %v1179 = vld [vmem:[#allocation4 + $0x8] sm:$0xff]
        %v1180 = vld [vmem:[#allocation4 + $0x10] sm:$0xff]
        %v1181 = vld [vmem:[#allocation4 + $0x18] sm:$0xff]
        %v1182 = vmul.f32 %v1165, %v1178
        %v1183 = vmul.f32 %v1169, %v1179
        %v1184 = vmul.f32 %v1165, %v1180
        %v1185 = vmul.f32 %v1169, %v1181
        %v1186 = vadd.f32 %v1182, %v1149
        %v1187 = vadd.f32 %v1183, %v1151
        %v1188 = vadd.f32 %v1184, %v1155
        %v1189 = vadd.f32 %v1185, %v1157
        %1190 = vst [vmem:[#allocation4] sm:$0xff] %v1186
        %1191 = vst [vmem:[#allocation4 + $0x8] sm:$0xff] %v1187
        %1192 = vst [vmem:[#allocation4 + $0x10] sm:$0xff] %v1188
        %1193 = vst [vmem:[#allocation4 + $0x18] sm:$0xff] %v1189
        %v1194 = vlaneseq
        %vm1195 = vcmp.ge.s32.totalorder %v1194, 0
        %vm1196 = vcmp.lt.s32.totalorder %v1194, 256
        %vm1197 = vmand %vm1195, %vm1196
        %1198 = vst.msk [vmem:[#allocation2] sm:$0x3] %vm1197, %v802
        // Predicated region
        $region57: #{tpu_custom_call.1} parent=35 // pred_check
          %p1199 = pneg %p371
        $region58: #{tpu_custom_call.1} parent=35 // pred_check_branch
          %1201 = sbr.rel (%p1199) target = $region60
        $region59: #{tpu_custom_call.1} parent=35 // pred_region
          %s1202 = scalar_lea.vmem [#allocation4], 16
          %v1203 = vld [vmem:[%s1202] ss:$8 sm:$0x3]
          %v1204 = vrcp.pop %v1203
          %v1205 = vld [vmem:[#allocation3] sm:$0xf]
          %v1206 = vld [vmem:[#allocation3 + $0x8] sm:$0xf]
          %v1208 = vlaneseq
          %v1209 = vshrl.u32 %v1208, 7
          %v1210 = vsub.s32 0, %v1209
          %v1211 = vrot.slane %v1204, %v1210
          %v1212 = vlaneseq
          %v1213 = vshrl.u32 %v1212, 7
          %v1214 = vsub.s32 1, %v1213
          %v1215 = vrot.slane %v1204, %v1214
          %v1218 = vmul.f32 %v1205, %v1211
          %v1219 = vmul.f32 %v1206, %v1215
          %v1220 = vld [vmem:[#allocation4] sm:$0xf]
          %v1221 = vld [vmem:[#allocation4 + $0x8] sm:$0xf]
          %v1222 = vmul.f32 %v1220, %v1211
          %v1223 = vmul.f32 %v1221, %v1215
          %v1224 = vmul.f32 %v1218, %v1218
          %v1225 = vmul.f32 %v1219, %v1219
          %v1226 = vsub.f32 %v1222, %v1224
          %v1227 = vsub.f32 %v1223, %v1225
          %v1228 = vmax.f32 %v1226, 0.0
          %v1229 = vmax.f32 %v1227, 0.0
          %v1230 = vrsqrt.pop %v1228
          %v1231 = vmul.f32 %v1228, %v1230
          %vm1232 = vcmp.eq.f32.partialorder %v1228, inf
          %v1233 = vsel %vm1232, %v1228, %v1231
          %vm1234 = vcmp.eq.f32.partialorder %v1228, 0.0
          %v1235 = vand.u32 %v1228, 2147483648
          %v1236 = vsel %vm1234, %v1235, %v1233
          %v1237 = vrsqrt.pop %v1229
          %v1238 = vmul.f32 %v1229, %v1237
          %vm1239 = vcmp.eq.f32.partialorder %v1229, inf
          %v1240 = vsel %vm1239, %v1229, %v1238
          %vm1241 = vcmp.eq.f32.partialorder %v1229, 0.0
          %v1242 = vand.u32 %v1229, 2147483648
          %v1243 = vsel %vm1241, %v1242, %v1240
          %v1244 = vld [vmem:[%s326] sm:$0xff]
          %v1246 = vcombine.high %v1244, %v1244
          %v1248 = vmul.f32 %v1236, %v1244
          %v1249 = vmul.f32 %v1243, %v1246
          %v1250 = vadd.f32 %v1248, %v1218
          %v1251 = vadd.f32 %v1249, %v1219
          %v1254 = vcombine.low %v1250, %v1251
          %1256 = vst [vmem:[%s365] sm:$0xff] %v1254
        $region60: #{tpu_custom_call.1} parent=35 // pred_fallthru
          _
        %s1257 = sand.u32 %s168, 1
        %s1258 = scalar_lea.sflag [#allocation7], %s1257
        %s1259 = sand.u32 %s168, 1
        %s1260 = smul.addr %s1259, 8
        %s1261 = scalar_lea.vmem [#allocation13], %s1260
        // Predicated region
        $region61: #{tpu_custom_call.1} parent=35 // pred_check
          %p1262 = pneg %p178
        $region62: #{tpu_custom_call.1} parent=35 // pred_check_branch
          %1264 = sbr.rel (%p1262) target = $region64
        $region63: #{tpu_custom_call.1} parent=35 // pred_region
          %s1265 = smul.u32 2, %s33
          %s1267 = ssub.s32 128, 128
          %1268 = vsyncadd %s1258, %s1267
          %s1269 = smul.addr %s32, 2
          %s1270 = sadd.s32 %s1265, %s1269
          %s1271 = smul.addr %s1270, 64
          %s1272 = scalar_lea.hbm %s4, %s1271
          %s1274 = sshll.u32 %s1261, 4
          %s1275 = int_to_ptr.vmem [resolvable:$true] %s1274
          %1277 = dma.vmem_to_hbm [thread:$0]  %s1275, 128, %s1272, %s1258
        $region64: #{tpu_custom_call.1} parent=35 // pred_fallthru
          _
      $region36: #{tpu_custom_call.1} parent=5 // pred_fallthru
        _
      %p1278 = scmp.le.s32.totalorder 2, %s22
      // Predicated region
      $region65: #{tpu_custom_call.1} parent=5 // pred_check
        %p1279 = pneg %p1278
      $region66: #{tpu_custom_call.1} parent=5 // pred_check_branch
        %1281 = sbr.rel (%p1279) target = $region68
      $region67: #{tpu_custom_call.1} parent=5 // pred_region
        %s1282 = ssub.s32 %s22, 2
        // Predicated region
        $region69: #{tpu_custom_call.1} parent=67 // pred_check
          %p1283 = pneg %p184
        $region70: #{tpu_custom_call.1} parent=67 // pred_check_branch
          %1285 = sbr.rel (%p1283) target = $region72
        $region71: #{tpu_custom_call.1} parent=67 // pred_region
          %s1286 = sand.u32 %s169, 1
          %s1287 = scalar_lea.sflag [#allocation7], %s1286
          %s1288 = sand.u32 %s169, 1
          %s1289 = smul.addr %s1288, 8
          %s1290 = scalar_lea.vmem [#allocation13], %s1289
          %1291 = dma.done %s1287, 128
        $region72: #{tpu_custom_call.1} parent=67 // pred_fallthru
          _
      $region68: #{tpu_custom_call.1} parent=5 // pred_fallthru
        _
    $region6: #{tpu_custom_call.1} parent=1 // loop_footer
      %s26 = sadd.s32 1, %s22
    $region7: #{tpu_custom_call.1} parent=1 // loop_footer_branch
      %21 = sbr.rel target = $region3
    $region8: #{tpu_custom_call.1} parent=1 // loop_exit
      _
    %1292 = vsyncpa [#allocation6], 1
    %s1293 = scalar_lea.sflag [#allocation6], 1
    %1294 = vsyncpa %s1293, 1
    %1295 = vsyncpa [#allocation9], 1
    %s1296 = scalar_lea.sflag [#allocation9], 1
    %1297 = vsyncpa %s1296, 1
    %1298 = vsyncpa [#allocation12], 1
    %s1299 = scalar_lea.sflag [#allocation12], 1
    %1300 = vsyncpa %s1299, 1
    %1301 = vsyncpa [#allocation7], 1
    %s1302 = scalar_lea.sflag [#allocation7], 1
    %1303 = vsyncpa %s1302, 1

</llo_original>
